<compile_context>
chip_gen: v7x
topology: tpu7x:2x2x1
jax: 0.10.0
libtpu: 0.0.40
codegen_flags: <defaults>
</compile_context>

<pallas_src>
import functools

import jax
import jax.numpy as jnp
from jax.experimental import pallas as pl
from jax.experimental.pallas import tpu as pltpu


def _leaky(x, slope=0.2):
    return jnp.where(x > 0, x, slope * x)


def _round_up(x, m):
    return ((x + m - 1) // m) * m


def atom_query_kernel(atom_xyz_ref, surf_t_ref, f1_ref,
                      w1d_ref, b1_ref, w2_ref, b2_ref, w3_ref, b3_ref,
                      out_ref, scratch_ref, *, k, batch_gather):
    # Per-grid-step blocks (channels-first):
    #   atom_xyz_ref : (N, 3)    atom coordinates
    #   surf_t_ref   : (3, TM)   surface-point coordinates (transposed), one M tile
    #   f1_ref       : (C, N)    w1f @ atom_feats, precomputed in the wrapper
    #   w1d (C,1) b1 (C,1)       conv1 distance column / folded bias
    #   w2 (C,C)  b2 (C,1)       conv2 (BN folded)
    #   w3 (C,2C) b3 (C,1)       conv3 (BN folded, un-split -> one MXU matmul)
    #   out_ref      : (C, TM)
    #   scratch_ref  : VMEM (N, k*TM) one-hot columns   (batch_gather=True)
    #                  VMEM (C, k*TM) conv1 activations (batch_gather=False)
    N = atom_xyz_ref.shape[0]
    C = f1_ref.shape[0]
    TM = out_ref.shape[1]

    ax = atom_xyz_ref[...].astype(jnp.float32)        # (N, 3)
    st = surf_t_ref[...].astype(jnp.float32)          # (3, TM)
    f1 = f1_ref[...]                                  # (C, N)
    w1d = w1d_ref[...]                                # (C, 1)
    b1 = b1_ref[...]                                  # (C, 1)

    # Pairwise squared distances on the VPU (contraction dim is 3 -> MXU would be underfilled).
    a2 = ax[:, 0:1] * ax[:, 0:1] + ax[:, 1:2] * ax[:, 1:2] + ax[:, 2:3] * ax[:, 2:3]   # (N, 1)
    s2 = st[0:1, :] * st[0:1, :] + st[1:2, :] * st[1:2, :] + st[2:3, :] * st[2:3, :]   # (1, TM)
    sa = ax[:, 0:1] * st[0:1, :] + ax[:, 1:2] * st[1:2, :] + ax[:, 2:3] * st[2:3, :]   # (N, TM)
    d2 = jnp.maximum(a2 + s2 - 2.0 * sa, 0.0)                                          # (N, TM)

    # Packed, IMMUTABLE ordering keys: d2 >= 0 so its f32 bit pattern is order-preserving as
    # int32; the low nb mantissa bits carry the atom index (tie-break = lowest index).
    nb = max(1, (N - 1).bit_length())
    inv_mask = jnp.int32(~((1 << nb) - 1))
    big = jnp.int32(2147483647)
    ridx = jax.lax.broadcasted_iota(jnp.int32, (N, TM), 0)
    key0 = (pltpu.bitcast(d2, jnp.int32) & inv_mask) | ridx                            # (N, TM)

    if not batch_gather:
        b1_bt = jnp.broadcast_to(b1, (C, TM))          # hoisted: JAX does not CSE broadcasts

    prev = None
    dist_list = []
    for j in range(k):
        # Mask out the j previously selected atoms (keys are unique -> `<= prev_min` removes
        # exactly them); no destructive key writeback.
        masked = key0 if j == 0 else jnp.where(key0 <= prev, big, key0)
        kmin = jnp.min(masked, axis=0, keepdims=True)                  # (1, TM)
        onehot = key0 == kmin                                          # (N, TM), one True/col
        ohf = onehot.astype(jnp.float32)
        # Exact distance of the selected atom (key packing is used for ordering only).
        d2_sel = jnp.sum(d2 * ohf, axis=0, keepdims=True)              # (1, TM)
        dist_j = jnp.sqrt(jnp.maximum(d2_sel, 0.0))                    # (1, TM)
        if batch_gather:
            scratch_ref[:, j * TM:(j + 1) * TM] = ohf                  # stage one-hot columns
            dist_list.append(dist_j)
        else:
            g = jnp.dot(f1, ohf, preferred_element_type=jnp.float32)   # (C, TM)
            scratch_ref[:, j * TM:(j + 1) * TM] = _leaky(g + w1d * dist_j + b1_bt)
        prev = kmin

    if batch_gather:
        # One (C,N)@(N,k*TM) gather matmul: f1 streams through the MXU once for all k rounds.
        g_all = jnp.dot(f1, scratch_ref[...], preferred_element_type=jnp.float32)  # (C, k*TM)
        dist_all = jnp.concatenate(dist_list, axis=1)                              # (1, k*TM)
        h1_all = _leaky(g_all + w1d * dist_all + b1)
    else:
        h1_all = scratch_ref[...]                                                  # (C, k*TM)

    # conv2 batched into one (C,C)@(C,k*TM) matmul.
    h2_all = _leaky(jnp.dot(w2_ref[...], h1_all,
                            preferred_element_type=jnp.float32) + b2_ref[...])

    # Neighbor sums via static 128-aligned lane slices (no cross-lane movement).
    s1 = h1_all[:, 0:TM]
    s2r = h2_all[:, 0:TM]
    for j in range(1, k):
        s1 = s1 + h1_all[:, j * TM:(j + 1) * TM]
        s2r = s2r + h2_all[:, j * TM:(j + 1) * TM]

    # conv3 fused: stack [s1; s2] along sublanes -> single (C,2C)@(2C,TM) matmul.
    cat = jnp.concatenate([s1, s2r], axis=0)                                       # (2C, TM)
    out = _leaky(jnp.dot(w3_ref[...], cat, preferred_element_type=jnp.float32) + b3_ref[...])
    out_ref[...] = out.astype(out_ref.dtype)


def _fold_bn(w, b, gamma, beta, rmean=None, rvar=None, eps=1e-5):
    # Eval-mode BN folded into the 1x1 conv:  y = scale*(Wx + b - mean) + beta
    w = jnp.asarray(w, jnp.float32)
    b = jnp.asarray(b, jnp.float32)
    gamma = jnp.asarray(gamma, jnp.float32)
    beta = jnp.asarray(beta, jnp.float32)
    rmean = jnp.zeros_like(b) if rmean is None else jnp.asarray(rmean, jnp.float32)
    rvar = jnp.ones_like(b) if rvar is None else jnp.asarray(rvar, jnp.float32)
    scale = gamma / jnp.sqrt(rvar + eps)
    w_eff = w * scale[:, None]                               # (Cout, Cin)
    b_eff = (scale * (b - rmean) + beta)[:, None]            # (Cout, 1)
    return w_eff, b_eff


def _vmem_caps():
    # Generation-aware: ~85% of per-TC VMEM as the scoped limit (never the full 64 MiB on
    # v7x), ~60% as the sizing budget (double buffers / compiler scratch headroom).
    cap = 64 * 1024 * 1024            # conservative default = v7x per-TC VMEM
    try:
        info = pltpu.get_tpu_info()
        c = getattr(info, "vmem_capacity_bytes", None)
        if c:
            cap = int(c)
    except Exception:
        pass
    return int(cap * 0.6), int(cap * 0.85)


def _pick_tiles(M, N, C, k, budget):
    # Pick the widest 128-aligned M tile (lane-dense stores) whose per-step VMEM estimate
    # fits the budget; prefer the batched one-hot gather, fall back to per-round gathers
    # when the (N, k*TM) one-hot scratch is too large.
    m128 = _round_up(max(M, 1), 128)
    n8, c8 = _round_up(N, 8), _round_up(C, 8)
    n128, c128 = _round_up(N, 128), _round_up(C, 128)

    fixed = 2 * n8 * 128 * 4                                  # atom_xyz block (lanes pad 3->128)
    fixed += 2 * c8 * n128 * 4                                # f1 block
    fixed += 2 * (4 * c8 * 128 + c8 * c128 + c8 * _round_up(2 * C, 128)) * 4   # weights/biases

    def per_tm(batch_gather):
        p = 2 * 8 * 4                                         # surf_t block
        p += 2 * c8 * 4                                       # out block
        p += 4 * n8 * 4                                       # key / d2 / masked / onehot values
        p += 2 * c8 * k * 4                                   # h1_all / h2_all values
        p += (n8 if batch_gather else c8) * k * 4             # scratch buffer
        return p

    for bg in (True, False):
        p = per_tm(bg)
        for cand in (512, 384, 256, 128):
            tm = min(cand, m128)
            if fixed + p * tm <= budget:
                return tm, bg
    return min(128, m128), False


def atom_query_forward(atom_feats, atom_xyz, surf_xyz, params, k):
    """atom_feats (B,C,N), atom_xyz (B,N,3), surf_xyz (B,M,3) -> (B,C,M)"""
    B, C, N = atom_feats.shape
    M = surf_xyz.shape[1]
    k = min(k, N)   # PyTorch falls back to KNN(k=N) when there are fewer atoms than k

    w1, b1 = _fold_bn(params["w1"], params["b1"], params["g1"], params["be1"],
                      params.get("rm1"), params.get("rv1"))
    w2, b2 = _fold_bn(params["w2"], params["b2"], params["g2"], params["be2"],
                      params.get("rm2"), params.get("rv2"))
    w3, b3 = _fold_bn(params["w3"], params["b3"], params["g3"], params["be3"],
                      params.get("rm3"), params.get("rv3"))
    w1f, w1d = w1[:, :C], w1[:, C:]

    atom_feats = atom_feats.astype(jnp.float32)
    atom_xyz = atom_xyz.astype(jnp.float32)
    # Hoist conv1's feature half out of the kernel: f1 is M-tile invariant.
    f1 = jnp.einsum("oc,bcn->bon", w1f, atom_feats)                   # (B, C, N)
    # Only the tiny coordinate tensor is transposed host-side.
    surf_t = jnp.transpose(surf_xyz, (0, 2, 1)).astype(jnp.float32)   # (B, 3, M)

    budget, vmem_limit = _vmem_caps()
    tm, batch_gather = _pick_tiles(M, N, C, k, budget)
    m_pad = _round_up(M, tm)
    if m_pad != M:
        surf_t = jnp.pad(surf_t, ((0, 0), (0, 0), (0, m_pad - M)))
    n_mt = m_pad // tm
    scratch_rows = N if batch_gather else C

    kern = functools.partial(atom_query_kernel, k=k, batch_gather=batch_gather)
    out = pl.pallas_call(
        kern,
        out_shape=jax.ShapeDtypeStruct((B, C, m_pad), jnp.float32),
        grid_spec=pltpu.PrefetchScalarGridSpec(
            num_scalar_prefetch=0,
            grid=(B, n_mt),
            in_specs=[
                pl.BlockSpec((None, N, 3), lambda b, m: (b, 0, 0)),    # atom coords
                pl.BlockSpec((None, 3, tm), lambda b, m: (b, 0, m)),   # surf coords^T tile
                pl.BlockSpec((None, C, N), lambda b, m: (b, 0, 0)),    # f1 = w1f @ feats
                pl.BlockSpec((C, 1), lambda b, m: (0, 0)),             # conv1 dist column
                pl.BlockSpec((C, 1), lambda b, m: (0, 0)),             # conv1 bias
                pl.BlockSpec((C, C), lambda b, m: (0, 0)),             # conv2 weight
                pl.BlockSpec((C, 1), lambda b, m: (0, 0)),             # conv2 bias
                pl.BlockSpec((C, 2 * C), lambda b, m: (0, 0)),         # conv3 weight (fused)
                pl.BlockSpec((C, 1), lambda b, m: (0, 0)),             # conv3 bias
            ],
            out_specs=pl.BlockSpec((None, C, tm), lambda b, m: (b, 0, m)),
            scratch_shapes=[pltpu.VMEM((scratch_rows, k * tm), jnp.float32)],
        ),
        compiler_params=pltpu.CompilerParams(
            dimension_semantics=("parallel", "parallel"),
            vmem_limit_bytes=vmem_limit,
        ),
    )(atom_xyz, surf_t, f1, w1d, b1, w2, b2, w3, b3)

    return out[:, :, :M] if m_pad != M else out


# ---------------------------------------------------------------------------
# Pure-JAX reference (mirrors the PyTorch forward with eval-mode BN) for checking.
# ---------------------------------------------------------------------------
def atom_query_reference(atom_feats, atom_xyz, surf_xyz, params, k, eps=1e-5):
    B, C, N = atom_feats.shape
    M = surf_xyz.shape[1]
    k = min(k, N)

    s2 = jnp.sum(surf_xyz ** 2, axis=-1, keepdims=True)          # (B, M, 1)
    a2 = jnp.sum(atom_xyz ** 2, axis=-1)[:, None, :]             # (B, 1, N)
    sa = jnp.einsum("bmd,bnd->bmn", surf_xyz, atom_xyz)
    d2 = s2 + a2 - 2.0 * sa                                      # (B, M, N)
    neg, idx = jax.lax.top_k(-d2, k)
    dist = jnp.sqrt(jnp.maximum(-neg, 0.0))                      # (B, M, k)

    feats_b = jnp.broadcast_to(atom_feats[:, :, None, :], (B, C, M, N))
    idx_b = jnp.broadcast_to(idx[:, None, :, :], (B, C, M, k))
    neb = jnp.take_along_axis(feats_b, idx_b, axis=-1)           # (B, C, M, k)
    x = jnp.concatenate([neb, dist[:, None, :, :]], axis=1)      # (B, C+1, M, k)

    def cbr(x, w, b, g, be, rm, rv):
        tail = (1,) * (x.ndim - 2)
        y = jnp.einsum("oi,bi...->bo...", w, x) + b.reshape((1, -1) + tail)
        scale = (g / jnp.sqrt(rv + eps)).reshape((1, -1) + tail)
        y = (y - rm.reshape((1, -1) + tail)) * scale + be.reshape((1, -1) + tail)
        return jnp.where(y > 0, y, 0.2 * y)

    h1 = cbr(x, params["w1"], params["b1"], params["g1"], params["be1"],
             params["rm1"], params["rv1"])
    sf1 = h1.sum(axis=-1)
    h2 = cbr(h1, params["w2"], params["b2"], params["g2"], params["be2"],
             params["rm2"], params["rv2"])
    sf2 = h2.sum(axis=-1)
    cat = jnp.concatenate([sf1, sf2], axis=1)                    # (B, 2C, M)
    return cbr(cat, params["w3"], params["b3"], params["g3"], params["be3"],
               params["rm3"], params["rv3"])


if __name__ == "__main__":
    B, C, N, M, K = 2, 32, 24, 64, 8

    key = jax.random.PRNGKey(0)
    ks = jax.random.split(key, 24)

    atom_feats = jax.random.normal(ks[0], (B, C, N), jnp.float32)
    atom_xyz = jax.random.normal(ks[1], (B, N, 3), jnp.float32)
    surf_xyz = jax.random.normal(ks[2], (B, M, 3), jnp.float32)

    params = {
        "w1": 0.2 * jax.random.normal(ks[3], (C, C + 1), jnp.float32),
        "b1": 0.1 * jax.random.normal(ks[4], (C,), jnp.float32),
        "g1": 1.0 + 0.1 * jax.random.normal(ks[5], (C,), jnp.float32),
        "be1": 0.1 * jax.random.normal(ks[6], (C,), jnp.float32),
        "rm1": 0.1 * jax.random.normal(ks[15], (C,), jnp.float32),
        "rv1": 0.5 + jax.random.uniform(ks[16], (C,), jnp.float32),
        "w2": 0.2 * jax.random.normal(ks[7], (C, C), jnp.float32),
        "b2": 0.1 * jax.random.normal(ks[8], (C,), jnp.float32),
        "g2": 1.0 + 0.1 * jax.random.normal(ks[9], (C,), jnp.float32),
        "be2": 0.1 * jax.random.normal(ks[10], (C,), jnp.float32),
        "rm2": 0.1 * jax.random.normal(ks[17], (C,), jnp.float32),
        "rv2": 0.5 + jax.random.uniform(ks[18], (C,), jnp.float32),
        "w3": 0.2 * jax.random.normal(ks[11], (C, 2 * C), jnp.float32),
        "b3": 0.1 * jax.random.normal(ks[12], (C,), jnp.float32),
        "g3": 1.0 + 0.1 * jax.random.normal(ks[13], (C,), jnp.float32),
        "be3": 0.1 * jax.random.normal(ks[14], (C,), jnp.float32),
        "rm3": 0.1 * jax.random.normal(ks[19], (C,), jnp.float32),
        "rv3": 0.5 + jax.random.uniform(ks[20], (C,), jnp.float32),
    }

    out = atom_query_forward(atom_feats, atom_xyz, surf_xyz, params, K)
    out = jax.block_until_ready(out)
    assert out.shape == (B, C, M), out.shape

    ref = atom_query_reference(atom_feats, atom_xyz, surf_xyz, params, K)
    ref = jax.block_until_ready(ref)
    err = float(jnp.max(jnp.abs(out - ref)))
    assert err < 1e-3, f"max abs error {err}"

    print("KERNEL_OK")
</pallas_src>

<mosaic_0001>
module attributes {stable_mosaic.version = 11 : i64} {
  func.func @atom_query_kernel(%arg0: i32, %arg1: i32, %arg2: memref<1x24x3xf32, #tpu.memory_space<vmem>>, %arg3: memref<1x3x128xf32, #tpu.memory_space<vmem>>, %arg4: memref<1x32x24xf32, #tpu.memory_space<vmem>>, %arg5: memref<32x1xf32, #tpu.memory_space<vmem>>, %arg6: memref<32x1xf32, #tpu.memory_space<vmem>>, %arg7: memref<32x32xf32, #tpu.memory_space<vmem>>, %arg8: memref<32x1xf32, #tpu.memory_space<vmem>>, %arg9: memref<32x64xf32, #tpu.memory_space<vmem>>, %arg10: memref<32x1xf32, #tpu.memory_space<vmem>>, %arg11: memref<1x32x128xf32, #tpu.memory_space<vmem>>, %arg12: memref<24x1024xf32, #tpu.memory_space<vmem>>) attributes {dimension_semantics = [#tpu.dimension_semantics<parallel>, #tpu.dimension_semantics<parallel>], iteration_bounds = array<i64: 2, 1>, scalar_prefetch = 0 : i64, scratch_operands = 1 : i64, tpu.core_type = #tpu.core_type<tc>, window_params = [{transform_indices = @transform_0, window_bounds = array<i64: 1, 24, 3>}, {transform_indices = @transform_1, window_bounds = array<i64: 1, 3, 128>}, {transform_indices = @transform_2, window_bounds = array<i64: 1, 32, 24>}, {pipeline_mode = #tpu.pipeline_mode<synchronous>, transform_indices = @transform_3, window_bounds = array<i64: 32, 1>}, {pipeline_mode = #tpu.pipeline_mode<synchronous>, transform_indices = @transform_4, window_bounds = array<i64: 32, 1>}, {pipeline_mode = #tpu.pipeline_mode<synchronous>, transform_indices = @transform_5, window_bounds = array<i64: 32, 32>}, {pipeline_mode = #tpu.pipeline_mode<synchronous>, transform_indices = @transform_6, window_bounds = array<i64: 32, 1>}, {pipeline_mode = #tpu.pipeline_mode<synchronous>, transform_indices = @transform_7, window_bounds = array<i64: 32, 64>}, {pipeline_mode = #tpu.pipeline_mode<synchronous>, transform_indices = @transform_8, window_bounds = array<i64: 32, 1>}, {transform_indices = @transform_9, window_bounds = array<i64: 1, 32, 128>}]} {
    %c0 = arith.constant 0 : index
    %c0_0 = arith.constant 0 : index
    %c0_1 = arith.constant 0 : index
    %0 = vector.load %arg2[%c0, %c0_0, %c0_1] : memref<1x24x3xf32, #tpu.memory_space<vmem>>, vector<1x24x3xf32>
    %1 = vector.shape_cast %0 : vector<1x24x3xf32> to vector<24x3xf32>
    %c0_2 = arith.constant 0 : index
    %c0_3 = arith.constant 0 : index
    %c0_4 = arith.constant 0 : index
    %2 = vector.load %arg3[%c0_2, %c0_3, %c0_4] : memref<1x3x128xf32, #tpu.memory_space<vmem>>, vector<1x3x128xf32>
    %3 = vector.shape_cast %2 : vector<1x3x128xf32> to vector<3x128xf32>
    %c0_5 = arith.constant 0 : index
    %c0_6 = arith.constant 0 : index
    %c0_7 = arith.constant 0 : index
    %4 = vector.load %arg4[%c0_5, %c0_6, %c0_7] : memref<1x32x24xf32, #tpu.memory_space<vmem>>, vector<1x32x24xf32>
    %5 = vector.shape_cast %4 : vector<1x32x24xf32> to vector<32x24xf32>
    %c0_8 = arith.constant 0 : index
    %c0_9 = arith.constant 0 : index
    %6 = vector.load %arg5[%c0_8, %c0_9] : memref<32x1xf32, #tpu.memory_space<vmem>>, vector<32x1xf32>
    %c0_10 = arith.constant 0 : index
    %c0_11 = arith.constant 0 : index
    %7 = vector.load %arg6[%c0_10, %c0_11] : memref<32x1xf32, #tpu.memory_space<vmem>>, vector<32x1xf32>
    %8 = vector.extract_strided_slice %1 {offsets = [0, 0], sizes = [24, 1], strides = [1, 1]} : vector<24x3xf32> to vector<24x1xf32>
    %9 = vector.extract_strided_slice %1 {offsets = [0, 0], sizes = [24, 1], strides = [1, 1]} : vector<24x3xf32> to vector<24x1xf32>
    %10 = arith.mulf %8, %9 : vector<24x1xf32>
    %11 = vector.extract_strided_slice %1 {offsets = [0, 1], sizes = [24, 1], strides = [1, 1]} : vector<24x3xf32> to vector<24x1xf32>
    %12 = vector.extract_strided_slice %1 {offsets = [0, 1], sizes = [24, 1], strides = [1, 1]} : vector<24x3xf32> to vector<24x1xf32>
    %13 = arith.mulf %11, %12 : vector<24x1xf32>
    %14 = arith.addf %10, %13 : vector<24x1xf32>
    %15 = vector.extract_strided_slice %1 {offsets = [0, 2], sizes = [24, 1], strides = [1, 1]} : vector<24x3xf32> to vector<24x1xf32>
    %16 = vector.extract_strided_slice %1 {offsets = [0, 2], sizes = [24, 1], strides = [1, 1]} : vector<24x3xf32> to vector<24x1xf32>
    %17 = arith.mulf %15, %16 : vector<24x1xf32>
    %18 = arith.addf %14, %17 : vector<24x1xf32>
    %19 = vector.extract_strided_slice %3 {offsets = [0, 0], sizes = [1, 128], strides = [1, 1]} : vector<3x128xf32> to vector<1x128xf32>
    %20 = vector.extract_strided_slice %3 {offsets = [0, 0], sizes = [1, 128], strides = [1, 1]} : vector<3x128xf32> to vector<1x128xf32>
    %21 = arith.mulf %19, %20 : vector<1x128xf32>
    %22 = vector.extract_strided_slice %3 {offsets = [1, 0], sizes = [1, 128], strides = [1, 1]} : vector<3x128xf32> to vector<1x128xf32>
    %23 = vector.extract_strided_slice %3 {offsets = [1, 0], sizes = [1, 128], strides = [1, 1]} : vector<3x128xf32> to vector<1x128xf32>
    %24 = arith.mulf %22, %23 : vector<1x128xf32>
    %25 = arith.addf %21, %24 : vector<1x128xf32>
    %26 = vector.extract_strided_slice %3 {offsets = [2, 0], sizes = [1, 128], strides = [1, 1]} : vector<3x128xf32> to vector<1x128xf32>
    %27 = vector.extract_strided_slice %3 {offsets = [2, 0], sizes = [1, 128], strides = [1, 1]} : vector<3x128xf32> to vector<1x128xf32>
    %28 = arith.mulf %26, %27 : vector<1x128xf32>
    %29 = arith.addf %25, %28 : vector<1x128xf32>
    %30 = vector.extract_strided_slice %1 {offsets = [0, 0], sizes = [24, 1], strides = [1, 1]} : vector<24x3xf32> to vector<24x1xf32>
    %31 = vector.extract_strided_slice %3 {offsets = [0, 0], sizes = [1, 128], strides = [1, 1]} : vector<3x128xf32> to vector<1x128xf32>
    %32 = vector.broadcast %30 : vector<24x1xf32> to vector<24x128xf32>
    %33 = vector.broadcast %31 : vector<1x128xf32> to vector<24x128xf32>
    %34 = arith.mulf %32, %33 : vector<24x128xf32>
    %35 = vector.extract_strided_slice %1 {offsets = [0, 1], sizes = [24, 1], strides = [1, 1]} : vector<24x3xf32> to vector<24x1xf32>
    %36 = vector.extract_strided_slice %3 {offsets = [1, 0], sizes = [1, 128], strides = [1, 1]} : vector<3x128xf32> to vector<1x128xf32>
    %37 = vector.broadcast %35 : vector<24x1xf32> to vector<24x128xf32>
    %38 = vector.broadcast %36 : vector<1x128xf32> to vector<24x128xf32>
    %39 = arith.mulf %37, %38 : vector<24x128xf32>
    %40 = arith.addf %34, %39 : vector<24x128xf32>
    %41 = vector.extract_strided_slice %1 {offsets = [0, 2], sizes = [24, 1], strides = [1, 1]} : vector<24x3xf32> to vector<24x1xf32>
    %42 = vector.extract_strided_slice %3 {offsets = [2, 0], sizes = [1, 128], strides = [1, 1]} : vector<3x128xf32> to vector<1x128xf32>
    %43 = vector.broadcast %41 : vector<24x1xf32> to vector<24x128xf32>
    %44 = vector.broadcast %42 : vector<1x128xf32> to vector<24x128xf32>
    %45 = arith.mulf %43, %44 : vector<24x128xf32>
    %46 = arith.addf %40, %45 : vector<24x128xf32>
    %47 = vector.broadcast %18 : vector<24x1xf32> to vector<24x128xf32>
    %48 = vector.broadcast %29 : vector<1x128xf32> to vector<24x128xf32>
    %49 = arith.addf %47, %48 : vector<24x128xf32>
    %cst = arith.constant 2.000000e+00 : f32
    %50 = vector.broadcast %cst : f32 to vector<24x128xf32>
    %51 = arith.mulf %50, %46 : vector<24x128xf32>
    %52 = arith.subf %49, %51 : vector<24x128xf32>
    %cst_12 = arith.constant 0.000000e+00 : f32
    %53 = vector.broadcast %cst_12 : f32 to vector<24x128xf32>
    %54 = arith.maximumf %52, %53 : vector<24x128xf32>
    %55 = tpu.iota {dimensions = array<i32: 0>} : vector<24x128xi32>
    %56 = tpu.bitcast %54 : vector<24x128xf32> -> vector<24x128xi32>
    %c-32_i32 = arith.constant -32 : i32
    %57 = vector.broadcast %c-32_i32 : i32 to vector<24x128xi32>
    %58 = arith.andi %56, %57 : vector<24x128xi32>
    %59 = arith.ori %58, %55 : vector<24x128xi32>
    %cst_13 = arith.constant dense<2147483647> : vector<128xi32>
    %60 = vector.multi_reduction <minsi>, %59, %cst_13 [0] : vector<24x128xi32> to vector<128xi32>
    %61 = vector.shape_cast %60 : vector<128xi32> to vector<1x128xi32>
    %62 = vector.broadcast %61 : vector<1x128xi32> to vector<24x128xi32>
    %63 = arith.cmpi eq, %59, %62 : vector<24x128xi32>
    %64 = arith.extui %63 : vector<24x128xi1> to vector<24x128xi32>
    %65 = arith.sitofp %64 : vector<24x128xi32> to vector<24x128xf32>
    %66 = arith.mulf %54, %65 : vector<24x128xf32>
    %cst_14 = arith.constant dense<0.000000e+00> : vector<128xf32>
    %67 = vector.multi_reduction <add>, %66, %cst_14 [0] : vector<24x128xf32> to vector<128xf32>
    %68 = vector.shape_cast %67 : vector<128xf32> to vector<1x128xf32>
    %cst_15 = arith.constant 0.000000e+00 : f32
    %69 = vector.broadcast %cst_15 : f32 to vector<1x128xf32>
    %70 = arith.maximumf %68, %69 : vector<1x128xf32>
    %71 = math.sqrt %70 : vector<1x128xf32>
    %c0_16 = arith.constant 0 : index
    %c0_17 = arith.constant 0 : index
    %72 = vector.load %arg12[%c0_16, %c0_17] : memref<24x1024xf32, #tpu.memory_space<vmem>>, vector<24x128xf32>
    tpu.vector_store %arg12[%c0_16, %c0_17], %65 {strides = array<i32>} : memref<24x1024xf32, #tpu.memory_space<vmem>>, vector<24x128xf32>,
    %73 = vector.broadcast %61 : vector<1x128xi32> to vector<24x128xi32>
    %74 = arith.cmpi sle, %59, %73 : vector<24x128xi32>
    %c2147483647_i32 = arith.constant 2147483647 : i32
    %75 = vector.broadcast %c2147483647_i32 : i32 to vector<24x128xi32>
    %76 = arith.select %74, %75, %59 : vector<24x128xi1>, vector<24x128xi32>
    %cst_18 = arith.constant dense<2147483647> : vector<128xi32>
    %77 = vector.multi_reduction <minsi>, %76, %cst_18 [0] : vector<24x128xi32> to vector<128xi32>
    %78 = vector.shape_cast %77 : vector<128xi32> to vector<1x128xi32>
    %79 = vector.broadcast %78 : vector<1x128xi32> to vector<24x128xi32>
    %80 = arith.cmpi eq, %59, %79 : vector<24x128xi32>
    %81 = arith.extui %80 : vector<24x128xi1> to vector<24x128xi32>
    %82 = arith.sitofp %81 : vector<24x128xi32> to vector<24x128xf32>
    %83 = arith.mulf %54, %82 : vector<24x128xf32>
    %cst_19 = arith.constant dense<0.000000e+00> : vector<128xf32>
    %84 = vector.multi_reduction <add>, %83, %cst_19 [0] : vector<24x128xf32> to vector<128xf32>
    %85 = vector.shape_cast %84 : vector<128xf32> to vector<1x128xf32>
    %cst_20 = arith.constant 0.000000e+00 : f32
    %86 = vector.broadcast %cst_20 : f32 to vector<1x128xf32>
    %87 = arith.maximumf %85, %86 : vector<1x128xf32>
    %88 = math.sqrt %87 : vector<1x128xf32>
    %c0_21 = arith.constant 0 : index
    %c128 = arith.constant 128 : index
    %89 = vector.load %arg12[%c0_21, %c128] : memref<24x1024xf32, #tpu.memory_space<vmem>>, vector<24x128xf32>
    tpu.vector_store %arg12[%c0_21, %c128], %82 {strides = array<i32>} : memref<24x1024xf32, #tpu.memory_space<vmem>>, vector<24x128xf32>,
    %90 = vector.broadcast %78 : vector<1x128xi32> to vector<24x128xi32>
    %91 = arith.cmpi sle, %59, %90 : vector<24x128xi32>
    %c2147483647_i32_22 = arith.constant 2147483647 : i32
    %92 = vector.broadcast %c2147483647_i32_22 : i32 to vector<24x128xi32>
    %93 = arith.select %91, %92, %59 : vector<24x128xi1>, vector<24x128xi32>
    %cst_23 = arith.constant dense<2147483647> : vector<128xi32>
    %94 = vector.multi_reduction <minsi>, %93, %cst_23 [0] : vector<24x128xi32> to vector<128xi32>
    %95 = vector.shape_cast %94 : vector<128xi32> to vector<1x128xi32>
    %96 = vector.broadcast %95 : vector<1x128xi32> to vector<24x128xi32>
    %97 = arith.cmpi eq, %59, %96 : vector<24x128xi32>
    %98 = arith.extui %97 : vector<24x128xi1> to vector<24x128xi32>
    %99 = arith.sitofp %98 : vector<24x128xi32> to vector<24x128xf32>
    %100 = arith.mulf %54, %99 : vector<24x128xf32>
    %cst_24 = arith.constant dense<0.000000e+00> : vector<128xf32>
    %101 = vector.multi_reduction <add>, %100, %cst_24 [0] : vector<24x128xf32> to vector<128xf32>
    %102 = vector.shape_cast %101 : vector<128xf32> to vector<1x128xf32>
    %cst_25 = arith.constant 0.000000e+00 : f32
    %103 = vector.broadcast %cst_25 : f32 to vector<1x128xf32>
    %104 = arith.maximumf %102, %103 : vector<1x128xf32>
    %105 = math.sqrt %104 : vector<1x128xf32>
    %c0_26 = arith.constant 0 : index
    %c256 = arith.constant 256 : index
    %106 = vector.load %arg12[%c0_26, %c256] : memref<24x1024xf32, #tpu.memory_space<vmem>>, vector<24x128xf32>
    tpu.vector_store %arg12[%c0_26, %c256], %99 {strides = array<i32>} : memref<24x1024xf32, #tpu.memory_space<vmem>>, vector<24x128xf32>,
    %107 = vector.broadcast %95 : vector<1x128xi32> to vector<24x128xi32>
    %108 = arith.cmpi sle, %59, %107 : vector<24x128xi32>
    %c2147483647_i32_27 = arith.constant 2147483647 : i32
    %109 = vector.broadcast %c2147483647_i32_27 : i32 to vector<24x128xi32>
    %110 = arith.select %108, %109, %59 : vector<24x128xi1>, vector<24x128xi32>
    %cst_28 = arith.constant dense<2147483647> : vector<128xi32>
    %111 = vector.multi_reduction <minsi>, %110, %cst_28 [0] : vector<24x128xi32> to vector<128xi32>
    %112 = vector.shape_cast %111 : vector<128xi32> to vector<1x128xi32>
    %113 = vector.broadcast %112 : vector<1x128xi32> to vector<24x128xi32>
    %114 = arith.cmpi eq, %59, %113 : vector<24x128xi32>
    %115 = arith.extui %114 : vector<24x128xi1> to vector<24x128xi32>
    %116 = arith.sitofp %115 : vector<24x128xi32> to vector<24x128xf32>
    %117 = arith.mulf %54, %116 : vector<24x128xf32>
    %cst_29 = arith.constant dense<0.000000e+00> : vector<128xf32>
    %118 = vector.multi_reduction <add>, %117, %cst_29 [0] : vector<24x128xf32> to vector<128xf32>
    %119 = vector.shape_cast %118 : vector<128xf32> to vector<1x128xf32>
    %cst_30 = arith.constant 0.000000e+00 : f32
    %120 = vector.broadcast %cst_30 : f32 to vector<1x128xf32>
    %121 = arith.maximumf %119, %120 : vector<1x128xf32>
    %122 = math.sqrt %121 : vector<1x128xf32>
    %c0_31 = arith.constant 0 : index
    %c384 = arith.constant 384 : index
    %123 = vector.load %arg12[%c0_31, %c384] : memref<24x1024xf32, #tpu.memory_space<vmem>>, vector<24x128xf32>
    tpu.vector_store %arg12[%c0_31, %c384], %116 {strides = array<i32>} : memref<24x1024xf32, #tpu.memory_space<vmem>>, vector<24x128xf32>,
    %124 = vector.broadcast %112 : vector<1x128xi32> to vector<24x128xi32>
    %125 = arith.cmpi sle, %59, %124 : vector<24x128xi32>
    %c2147483647_i32_32 = arith.constant 2147483647 : i32
    %126 = vector.broadcast %c2147483647_i32_32 : i32 to vector<24x128xi32>
    %127 = arith.select %125, %126, %59 : vector<24x128xi1>, vector<24x128xi32>
    %cst_33 = arith.constant dense<2147483647> : vector<128xi32>
    %128 = vector.multi_reduction <minsi>, %127, %cst_33 [0] : vector<24x128xi32> to vector<128xi32>
    %129 = vector.shape_cast %128 : vector<128xi32> to vector<1x128xi32>
    %130 = vector.broadcast %129 : vector<1x128xi32> to vector<24x128xi32>
    %131 = arith.cmpi eq, %59, %130 : vector<24x128xi32>
    %132 = arith.extui %131 : vector<24x128xi1> to vector<24x128xi32>
    %133 = arith.sitofp %132 : vector<24x128xi32> to vector<24x128xf32>
    %134 = arith.mulf %54, %133 : vector<24x128xf32>
    %cst_34 = arith.constant dense<0.000000e+00> : vector<128xf32>
    %135 = vector.multi_reduction <add>, %134, %cst_34 [0] : vector<24x128xf32> to vector<128xf32>
    %136 = vector.shape_cast %135 : vector<128xf32> to vector<1x128xf32>
    %cst_35 = arith.constant 0.000000e+00 : f32
    %137 = vector.broadcast %cst_35 : f32 to vector<1x128xf32>
    %138 = arith.maximumf %136, %137 : vector<1x128xf32>
    %139 = math.sqrt %138 : vector<1x128xf32>
    %c0_36 = arith.constant 0 : index
    %c512 = arith.constant 512 : index
    %140 = vector.load %arg12[%c0_36, %c512] : memref<24x1024xf32, #tpu.memory_space<vmem>>, vector<24x128xf32>
    tpu.vector_store %arg12[%c0_36, %c512], %133 {strides = array<i32>} : memref<24x1024xf32, #tpu.memory_space<vmem>>, vector<24x128xf32>,
    %141 = vector.broadcast %129 : vector<1x128xi32> to vector<24x128xi32>
    %142 = arith.cmpi sle, %59, %141 : vector<24x128xi32>
    %c2147483647_i32_37 = arith.constant 2147483647 : i32
    %143 = vector.broadcast %c2147483647_i32_37 : i32 to vector<24x128xi32>
    %144 = arith.select %142, %143, %59 : vector<24x128xi1>, vector<24x128xi32>
    %cst_38 = arith.constant dense<2147483647> : vector<128xi32>
    %145 = vector.multi_reduction <minsi>, %144, %cst_38 [0] : vector<24x128xi32> to vector<128xi32>
    %146 = vector.shape_cast %145 : vector<128xi32> to vector<1x128xi32>
    %147 = vector.broadcast %146 : vector<1x128xi32> to vector<24x128xi32>
    %148 = arith.cmpi eq, %59, %147 : vector<24x128xi32>
    %149 = arith.extui %148 : vector<24x128xi1> to vector<24x128xi32>
    %150 = arith.sitofp %149 : vector<24x128xi32> to vector<24x128xf32>
    %151 = arith.mulf %54, %150 : vector<24x128xf32>
    %cst_39 = arith.constant dense<0.000000e+00> : vector<128xf32>
    %152 = vector.multi_reduction <add>, %151, %cst_39 [0] : vector<24x128xf32> to vector<128xf32>
    %153 = vector.shape_cast %152 : vector<128xf32> to vector<1x128xf32>
    %cst_40 = arith.constant 0.000000e+00 : f32
    %154 = vector.broadcast %cst_40 : f32 to vector<1x128xf32>
    %155 = arith.maximumf %153, %154 : vector<1x128xf32>
    %156 = math.sqrt %155 : vector<1x128xf32>
    %c0_41 = arith.constant 0 : index
    %c640 = arith.constant 640 : index
    %157 = vector.load %arg12[%c0_41, %c640] : memref<24x1024xf32, #tpu.memory_space<vmem>>, vector<24x128xf32>
    tpu.vector_store %arg12[%c0_41, %c640], %150 {strides = array<i32>} : memref<24x1024xf32, #tpu.memory_space<vmem>>, vector<24x128xf32>,
    %158 = vector.broadcast %146 : vector<1x128xi32> to vector<24x128xi32>
    %159 = arith.cmpi sle, %59, %158 : vector<24x128xi32>
    %c2147483647_i32_42 = arith.constant 2147483647 : i32
    %160 = vector.broadcast %c2147483647_i32_42 : i32 to vector<24x128xi32>
    %161 = arith.select %159, %160, %59 : vector<24x128xi1>, vector<24x128xi32>
    %cst_43 = arith.constant dense<2147483647> : vector<128xi32>
    %162 = vector.multi_reduction <minsi>, %161, %cst_43 [0] : vector<24x128xi32> to vector<128xi32>
    %163 = vector.shape_cast %162 : vector<128xi32> to vector<1x128xi32>
    %164 = vector.broadcast %163 : vector<1x128xi32> to vector<24x128xi32>
    %165 = arith.cmpi eq, %59, %164 : vector<24x128xi32>
    %166 = arith.extui %165 : vector<24x128xi1> to vector<24x128xi32>
    %167 = arith.sitofp %166 : vector<24x128xi32> to vector<24x128xf32>
    %168 = arith.mulf %54, %167 : vector<24x128xf32>
    %cst_44 = arith.constant dense<0.000000e+00> : vector<128xf32>
    %169 = vector.multi_reduction <add>, %168, %cst_44 [0] : vector<24x128xf32> to vector<128xf32>
    %170 = vector.shape_cast %169 : vector<128xf32> to vector<1x128xf32>
    %cst_45 = arith.constant 0.000000e+00 : f32
    %171 = vector.broadcast %cst_45 : f32 to vector<1x128xf32>
    %172 = arith.maximumf %170, %171 : vector<1x128xf32>
    %173 = math.sqrt %172 : vector<1x128xf32>
    %c0_46 = arith.constant 0 : index
    %c768 = arith.constant 768 : index
    %174 = vector.load %arg12[%c0_46, %c768] : memref<24x1024xf32, #tpu.memory_space<vmem>>, vector<24x128xf32>
    tpu.vector_store %arg12[%c0_46, %c768], %167 {strides = array<i32>} : memref<24x1024xf32, #tpu.memory_space<vmem>>, vector<24x128xf32>,
    %175 = vector.broadcast %163 : vector<1x128xi32> to vector<24x128xi32>
    %176 = arith.cmpi sle, %59, %175 : vector<24x128xi32>
    %c2147483647_i32_47 = arith.constant 2147483647 : i32
    %177 = vector.broadcast %c2147483647_i32_47 : i32 to vector<24x128xi32>
    %178 = arith.select %176, %177, %59 : vector<24x128xi1>, vector<24x128xi32>
    %cst_48 = arith.constant dense<2147483647> : vector<128xi32>
    %179 = vector.multi_reduction <minsi>, %178, %cst_48 [0] : vector<24x128xi32> to vector<128xi32>
    %180 = vector.shape_cast %179 : vector<128xi32> to vector<1x128xi32>
    %181 = vector.broadcast %180 : vector<1x128xi32> to vector<24x128xi32>
    %182 = arith.cmpi eq, %59, %181 : vector<24x128xi32>
    %183 = arith.extui %182 : vector<24x128xi1> to vector<24x128xi32>
    %184 = arith.sitofp %183 : vector<24x128xi32> to vector<24x128xf32>
    %185 = arith.mulf %54, %184 : vector<24x128xf32>
    %cst_49 = arith.constant dense<0.000000e+00> : vector<128xf32>
    %186 = vector.multi_reduction <add>, %185, %cst_49 [0] : vector<24x128xf32> to vector<128xf32>
    %187 = vector.shape_cast %186 : vector<128xf32> to vector<1x128xf32>
    %cst_50 = arith.constant 0.000000e+00 : f32
    %188 = vector.broadcast %cst_50 : f32 to vector<1x128xf32>
    %189 = arith.maximumf %187, %188 : vector<1x128xf32>
    %190 = math.sqrt %189 : vector<1x128xf32>
    %c0_51 = arith.constant 0 : index
    %c896 = arith.constant 896 : index
    %191 = vector.load %arg12[%c0_51, %c896] : memref<24x1024xf32, #tpu.memory_space<vmem>>, vector<24x128xf32>
    tpu.vector_store %arg12[%c0_51, %c896], %184 {strides = array<i32>} : memref<24x1024xf32, #tpu.memory_space<vmem>>, vector<24x128xf32>,
    %c0_52 = arith.constant 0 : index
    %c0_53 = arith.constant 0 : index
    %192 = vector.load %arg12[%c0_52, %c0_53] : memref<24x1024xf32, #tpu.memory_space<vmem>>, vector<24x1024xf32>
    %cst_54 = arith.constant dense<0.000000e+00> : vector<32x1024xf32>
    %193 = tpu.matmul %5, %192, %cst_54 {dimension_numbers = #tpu.dot_dimension_numbers<[1], [0], [0], [1], [0, 0, 1, 1], [], []>} : vector<32x24xf32>, vector<24x1024xf32>, vector<32x1024xf32> -> vector<32x1024xf32>
    %194 = tpu.concatenate %71, %88, %105, %122, %139, %156, %173, %190 in 1 : vector<1x128xf32>, vector<1x128xf32>, vector<1x128xf32>, vector<1x128xf32>, vector<1x128xf32>, vector<1x128xf32>, vector<1x128xf32>, vector<1x128xf32> -> vector<1x1024xf32>
    %195 = vector.broadcast %6 : vector<32x1xf32> to vector<32x1024xf32>
    %196 = vector.broadcast %194 : vector<1x1024xf32> to vector<32x1024xf32>
    %197 = arith.mulf %195, %196 : vector<32x1024xf32>
    %198 = arith.addf %193, %197 : vector<32x1024xf32>
    %199 = vector.broadcast %7 : vector<32x1xf32> to vector<32x1024xf32>
    %200 = arith.addf %198, %199 : vector<32x1024xf32>
    %cst_55 = arith.constant 0.000000e+00 : f32
    %201 = vector.broadcast %cst_55 : f32 to vector<32x1024xf32>
    %202 = arith.cmpf ogt, %200, %201 : vector<32x1024xf32>
    %cst_56 = arith.constant 2.000000e-01 : f32
    %203 = vector.broadcast %cst_56 : f32 to vector<32x1024xf32>
    %204 = arith.mulf %203, %200 : vector<32x1024xf32>
    %205 = arith.select %202, %200, %204 : vector<32x1024xi1>, vector<32x1024xf32>
    %c0_57 = arith.constant 0 : index
    %c0_58 = arith.constant 0 : index
    %206 = vector.load %arg7[%c0_57, %c0_58] : memref<32x32xf32, #tpu.memory_space<vmem>>, vector<32x32xf32>
    %cst_59 = arith.constant dense<0.000000e+00> : vector<32x1024xf32>
    %207 = tpu.matmul %206, %205, %cst_59 {dimension_numbers = #tpu.dot_dimension_numbers<[1], [0], [0], [1], [0, 0, 1, 1], [], []>} : vector<32x32xf32>, vector<32x1024xf32>, vector<32x1024xf32> -> vector<32x1024xf32>
    %c0_60 = arith.constant 0 : index
    %c0_61 = arith.constant 0 : index
    %208 = vector.load %arg8[%c0_60, %c0_61] : memref<32x1xf32, #tpu.memory_space<vmem>>, vector<32x1xf32>
    %209 = vector.broadcast %208 : vector<32x1xf32> to vector<32x1024xf32>
    %210 = arith.addf %207, %209 : vector<32x1024xf32>
    %cst_62 = arith.constant 0.000000e+00 : f32
    %211 = vector.broadcast %cst_62 : f32 to vector<32x1024xf32>
    %212 = arith.cmpf ogt, %210, %211 : vector<32x1024xf32>
    %cst_63 = arith.constant 2.000000e-01 : f32
    %213 = vector.broadcast %cst_63 : f32 to vector<32x1024xf32>
    %214 = arith.mulf %213, %210 : vector<32x1024xf32>
    %215 = arith.select %212, %210, %214 : vector<32x1024xi1>, vector<32x1024xf32>
    %216 = vector.extract_strided_slice %205 {offsets = [0, 0], sizes = [32, 128], strides = [1, 1]} : vector<32x1024xf32> to vector<32x128xf32>
    %217 = vector.extract_strided_slice %215 {offsets = [0, 0], sizes = [32, 128], strides = [1, 1]} : vector<32x1024xf32> to vector<32x128xf32>
    %218 = vector.extract_strided_slice %205 {offsets = [0, 128], sizes = [32, 128], strides = [1, 1]} : vector<32x1024xf32> to vector<32x128xf32>
    %219 = arith.addf %216, %218 : vector<32x128xf32>
    %220 = vector.extract_strided_slice %215 {offsets = [0, 128], sizes = [32, 128], strides = [1, 1]} : vector<32x1024xf32> to vector<32x128xf32>
    %221 = arith.addf %217, %220 : vector<32x128xf32>
    %222 = vector.extract_strided_slice %205 {offsets = [0, 256], sizes = [32, 128], strides = [1, 1]} : vector<32x1024xf32> to vector<32x128xf32>
    %223 = arith.addf %219, %222 : vector<32x128xf32>
    %224 = vector.extract_strided_slice %215 {offsets = [0, 256], sizes = [32, 128], strides = [1, 1]} : vector<32x1024xf32> to vector<32x128xf32>
    %225 = arith.addf %221, %224 : vector<32x128xf32>
    %226 = vector.extract_strided_slice %205 {offsets = [0, 384], sizes = [32, 128], strides = [1, 1]} : vector<32x1024xf32> to vector<32x128xf32>
    %227 = arith.addf %223, %226 : vector<32x128xf32>
    %228 = vector.extract_strided_slice %215 {offsets = [0, 384], sizes = [32, 128], strides = [1, 1]} : vector<32x1024xf32> to vector<32x128xf32>
    %229 = arith.addf %225, %228 : vector<32x128xf32>
    %230 = vector.extract_strided_slice %205 {offsets = [0, 512], sizes = [32, 128], strides = [1, 1]} : vector<32x1024xf32> to vector<32x128xf32>
    %231 = arith.addf %227, %230 : vector<32x128xf32>
    %232 = vector.extract_strided_slice %215 {offsets = [0, 512], sizes = [32, 128], strides = [1, 1]} : vector<32x1024xf32> to vector<32x128xf32>
    %233 = arith.addf %229, %232 : vector<32x128xf32>
    %234 = vector.extract_strided_slice %205 {offsets = [0, 640], sizes = [32, 128], strides = [1, 1]} : vector<32x1024xf32> to vector<32x128xf32>
    %235 = arith.addf %231, %234 : vector<32x128xf32>
    %236 = vector.extract_strided_slice %215 {offsets = [0, 640], sizes = [32, 128], strides = [1, 1]} : vector<32x1024xf32> to vector<32x128xf32>
    %237 = arith.addf %233, %236 : vector<32x128xf32>
    %238 = vector.extract_strided_slice %205 {offsets = [0, 768], sizes = [32, 128], strides = [1, 1]} : vector<32x1024xf32> to vector<32x128xf32>
    %239 = arith.addf %235, %238 : vector<32x128xf32>
    %240 = vector.extract_strided_slice %215 {offsets = [0, 768], sizes = [32, 128], strides = [1, 1]} : vector<32x1024xf32> to vector<32x128xf32>
    %241 = arith.addf %237, %240 : vector<32x128xf32>
    %242 = vector.extract_strided_slice %205 {offsets = [0, 896], sizes = [32, 128], strides = [1, 1]} : vector<32x1024xf32> to vector<32x128xf32>
    %243 = arith.addf %239, %242 : vector<32x128xf32>
    %244 = vector.extract_strided_slice %215 {offsets = [0, 896], sizes = [32, 128], strides = [1, 1]} : vector<32x1024xf32> to vector<32x128xf32>
    %245 = arith.addf %241, %244 : vector<32x128xf32>
    %246 = tpu.concatenate %243, %245 in 0 : vector<32x128xf32>, vector<32x128xf32> -> vector<64x128xf32>
    %c0_64 = arith.constant 0 : index
    %c0_65 = arith.constant 0 : index
    %247 = vector.load %arg9[%c0_64, %c0_65] : memref<32x64xf32, #tpu.memory_space<vmem>>, vector<32x64xf32>
    %cst_66 = arith.constant dense<0.000000e+00> : vector<32x128xf32>
    %248 = tpu.matmul %247, %246, %cst_66 {dimension_numbers = #tpu.dot_dimension_numbers<[1], [0], [0], [1], [0, 0, 1, 1], [], []>} : vector<32x64xf32>, vector<64x128xf32>, vector<32x128xf32> -> vector<32x128xf32>
    %c0_67 = arith.constant 0 : index
    %c0_68 = arith.constant 0 : index
    %249 = vector.load %arg10[%c0_67, %c0_68] : memref<32x1xf32, #tpu.memory_space<vmem>>, vector<32x1xf32>
    %250 = vector.broadcast %249 : vector<32x1xf32> to vector<32x128xf32>
    %251 = arith.addf %248, %250 : vector<32x128xf32>
    %cst_69 = arith.constant 0.000000e+00 : f32
    %252 = vector.broadcast %cst_69 : f32 to vector<32x128xf32>
    %253 = arith.cmpf ogt, %251, %252 : vector<32x128xf32>
    %cst_70 = arith.constant 2.000000e-01 : f32
    %254 = vector.broadcast %cst_70 : f32 to vector<32x128xf32>
    %255 = arith.mulf %254, %251 : vector<32x128xf32>
    %256 = arith.select %253, %251, %255 : vector<32x128xi1>, vector<32x128xf32>
    %c0_71 = arith.constant 0 : index
    %c0_72 = arith.constant 0 : index
    %c0_73 = arith.constant 0 : index
    %257 = vector.load %arg11[%c0_71, %c0_72, %c0_73] : memref<1x32x128xf32, #tpu.memory_space<vmem>>, vector<1x32x128xf32>
    %258 = vector.shape_cast %257 : vector<1x32x128xf32> to vector<32x128xf32>
    %259 = vector.shape_cast %256 : vector<32x128xf32> to vector<1x32x128xf32>
    tpu.vector_store %arg11[%c0_71, %c0_72, %c0_73], %259 {strides = array<i32>} : memref<1x32x128xf32, #tpu.memory_space<vmem>>, vector<1x32x128xf32>,
    return
  }
  func.func @transform_0(%arg0: i32, %arg1: i32) -> (i32, i32, i32) {
    %c0_i32 = arith.constant 0 : i32
    %c0_i32_0 = arith.constant 0 : i32
    %c0_i32_1 = arith.constant 0 : i32
    return %arg0, %c0_i32, %c0_i32_0 : i32, i32, i32
  }
  func.func @transform_1(%arg0: i32, %arg1: i32) -> (i32, i32, i32) {
    %c0_i32 = arith.constant 0 : i32
    %c0_i32_0 = arith.constant 0 : i32
    return %arg0, %c0_i32, %arg1 : i32, i32, i32
  }
  func.func @transform_2(%arg0: i32, %arg1: i32) -> (i32, i32, i32) {
    %c0_i32 = arith.constant 0 : i32
    %c0_i32_0 = arith.constant 0 : i32
    %c0_i32_1 = arith.constant 0 : i32
    return %arg0, %c0_i32, %c0_i32_0 : i32, i32, i32
  }
  func.func @transform_3(%arg0: i32, %arg1: i32) -> (i32, i32) {
    %c0_i32 = arith.constant 0 : i32
    %c0_i32_0 = arith.constant 0 : i32
    %c0_i32_1 = arith.constant 0 : i32
    return %c0_i32, %c0_i32_0 : i32, i32
  }
  func.func @transform_4(%arg0: i32, %arg1: i32) -> (i32, i32) {
    %c0_i32 = arith.constant 0 : i32
    %c0_i32_0 = arith.constant 0 : i32
    %c0_i32_1 = arith.constant 0 : i32
    return %c0_i32, %c0_i32_0 : i32, i32
  }
  func.func @transform_5(%arg0: i32, %arg1: i32) -> (i32, i32) {
    %c0_i32 = arith.constant 0 : i32
    %c0_i32_0 = arith.constant 0 : i32
    %c0_i32_1 = arith.constant 0 : i32
    return %c0_i32, %c0_i32_0 : i32, i32
  }
  func.func @transform_6(%arg0: i32, %arg1: i32) -> (i32, i32) {
    %c0_i32 = arith.constant 0 : i32
    %c0_i32_0 = arith.constant 0 : i32
    %c0_i32_1 = arith.constant 0 : i32
    return %c0_i32, %c0_i32_0 : i32, i32
  }
  func.func @transform_7(%arg0: i32, %arg1: i32) -> (i32, i32) {
    %c0_i32 = arith.constant 0 : i32
    %c0_i32_0 = arith.constant 0 : i32
    %c0_i32_1 = arith.constant 0 : i32
    return %c0_i32, %c0_i32_0 : i32, i32
  }
  func.func @transform_8(%arg0: i32, %arg1: i32) -> (i32, i32) {
    %c0_i32 = arith.constant 0 : i32
    %c0_i32_0 = arith.constant 0 : i32
    %c0_i32_1 = arith.constant 0 : i32
    return %c0_i32, %c0_i32_0 : i32, i32
  }
  func.func @transform_9(%arg0: i32, %arg1: i32) -> (i32, i32, i32) {
    %c0_i32 = arith.constant 0 : i32
    %c0_i32_0 = arith.constant 0 : i32
    return %arg0, %c0_i32, %arg1 : i32, i32, i32
  }
}

</mosaic_0001>

<llo_original>
// kernel: tpu_custom_call.1
$region0: #{tpu_custom_call.1}
  #allocation0 [shape = 'u32[]', space=smem, size = 0x4, offset = 0x4, fixed_abs, tag = 'smem constant byte address 0x4 - core index']
  #allocation1 [shape = 'u32[144,128]{1,0:T(1,128)}', space=vmem, size = 0x12000, scoped, tag = 'internal scratch']
  #allocation2 [shape = 'f32[24,1024]{1,0:T(8,128)}', space=vmem, size = 0x18000, scoped, tag = 'scratch operand']
  %s0 = inlined_call_operand.vmem [shape: f32[2,24,3], index: 0, kind: input, shape index: {}]
  %s1 = inlined_call_operand.vmem [shape: f32[2,3,128], index: 1, kind: input, shape index: {}]
  %s2 = inlined_call_operand.vmem [shape: f32[2,32,24], index: 2, kind: input, shape index: {}]
  %s3 = inlined_call_operand.vmem [shape: f32[32,1], index: 3, kind: input, shape index: {}]
  %s4 = inlined_call_operand.vmem [shape: f32[32,1], index: 4, kind: input, shape index: {}]
  %s5 = inlined_call_operand.vmem [shape: f32[32,32], index: 5, kind: input, shape index: {}]
  %s6 = inlined_call_operand.vmem [shape: f32[32,1], index: 6, kind: input, shape index: {}]
  %s7 = inlined_call_operand.vmem [shape: f32[32,64], index: 7, kind: input, shape index: {}]
  %s8 = inlined_call_operand.vmem [shape: f32[32,1], index: 8, kind: input, shape index: {}]
  %s9 = inlined_call_operand.hbm [shape: f32[2,32,128], index: 9, kind: output, shape index: {}]
  %s10 = sld [smem:[#allocation0]]
  $region69: #{tpu_custom_call.1} parent=0
    _
  %s12 = ssub.s32 1, %s10
  %s13 = scalar_select 0, %s12, %s10
  $region1: #{tpu_custom_call.1} parent=0
    #allocation3 [shape = 'u8[32768]{0}', space=vmem, size = 0x8000, scoped, tag = 'output window, operand 0']
    #allocation4 [shape = 's32[2]{0}', space=sflag, size = 0x8, scoped, tag = 'scoped memory for tpu_custom_call.1']
    %14 = vsyncpa [#allocation4], 0
    %s15 = scalar_lea.sflag [#allocation4], 1
    %16 = vsyncpa %s15, 0
    loop: start=0, step=1, limit=4
    $region2: #{tpu_custom_call.1} parent=1 // loop_pre_header
      _
    $region3: #{tpu_custom_call.1} parent=1 // loop_header
      %s18 = sphi 0, %s22
      %p19 = scmp.ge.s32.totalorder %s18, 4
      %s25 = sphi 0, %s37
      %s26 = sphi 0, %s33
      %s27 = sphi 0, %s25
      %s28 = sphi 0, %s26
      %s29 = sphi 0, %s27
      %s30 = sphi 0, %s28
      %s40 = sphi 0, %s42
      %s43 = sphi 0, %s40
      %s44 = sphi 0, %s43
      %s60 = sphi 0, %s44
      %s68 = sphi 0, %s70
      %s71 = sphi 0, %s68
      %s72 = sphi 0, %s71
      %s88 = sphi 0, %s72
      %s94 = sphi 0, %s96
      %s97 = sphi 0, %s94
      %s98 = sphi 0, %s97
      %s114 = sphi 0, %s98
      %s118 = sphi 0, %s118
      %s120 = sphi 0, %s118
      %s121 = sphi 0, %s120
      %s135 = sphi 0, %s121
      %s139 = sphi 0, %s139
      %s141 = sphi 0, %s139
      %s142 = sphi 0, %s141
      %s156 = sphi 0, %s142
      %s160 = sphi 0, %s160
      %s162 = sphi 0, %s160
      %s163 = sphi 0, %s162
      %s177 = sphi 0, %s163
      %s181 = sphi 0, %s181
      %s183 = sphi 0, %s181
      %s184 = sphi 0, %s183
      %s198 = sphi 0, %s184
      %s202 = sphi 0, %s202
      %s204 = sphi 0, %s202
      %s205 = sphi 0, %s204
      %s219 = sphi 0, %s205
      %s223 = sphi 0, %s223
      %s225 = sphi 0, %s223
      %s226 = sphi 0, %s225
      %s240 = sphi 0, %s226
      %s248 = sphi 0, %s250
      %s251 = sphi 0, %s248
      %s252 = sphi 0, %s251
      %s268 = sphi 0, %s252
    $region4: #{tpu_custom_call.1} parent=1 // loop_header_branch
      %21 = sbr.rel (%p19) target = $region8
    $region5: #{tpu_custom_call.1} parent=1 // loop_body
      %s23 = ssub.s32 %s18, 1
      %s24 = ssub.s32 %s18, 2
      %s31 = sadd.s32 1, %s26
      %p32 = scmp.ge.s32.totalorder %s31, 1
      %s33 = scalar_select %p32, 0, %s31
      %s34 = sadd.s32 1, %s25
      %s35 = scalar_select %p32, %s34, %s25
      %p36 = scmp.ge.s32.totalorder %s35, 2
      %s37 = scalar_select %p36, 0, %s35
      %s38 = ssub.s32 %s25, %s37
      %p39 = scmp.eq.s32.totalorder %s38, 0
      %s41 = sadd.s32 %s40, 1
      %s42 = scalar_select %p39, %s40, %s41
      %p45 = pneg %p39
      %p46 = scmp.eq.s32.totalorder %s18, 1
      %p47 = por %p45, %p46
      %p48 = scmp.ne.s32.totalorder %s40, %s43
      %p49 = scmp.eq.s32.totalorder %s18, 0
      %p50 = por %p48, %p49
      %p51 = scmp.ne.s32.totalorder %s40, %s43
      %p52 = scmp.eq.s32.totalorder %s23, 1
      %p53 = por %p51, %p52
      %p54 = scmp.ne.s32.totalorder %s43, %s44
      %p55 = scmp.eq.s32.totalorder %s23, 0
      %p56 = por %p54, %p55
      %p57 = scmp.ne.s32.totalorder %s43, %s44
      %p58 = scmp.eq.s32.totalorder %s24, 1
      %p59 = por %p57, %p58
      %p61 = scmp.ne.s32.totalorder %s44, %s60
      %p62 = scmp.eq.s32.totalorder %s24, 0
      %p63 = por %p61, %p62
      %s64 = ssub.s32 %s25, %s37
      %s65 = ssub.s32 %s26, %s33
      %s66 = sor.u32 %s64, %s65
      %p67 = scmp.eq.s32.totalorder %s66, 0
      %s69 = sadd.s32 %s68, 1
      %s70 = scalar_select %p67, %s68, %s69
      %p73 = pneg %p67
      %p74 = scmp.eq.s32.totalorder %s18, 1
      %p75 = por %p73, %p74
      %p76 = scmp.ne.s32.totalorder %s68, %s71
      %p77 = scmp.eq.s32.totalorder %s18, 0
      %p78 = por %p76, %p77
      %p79 = scmp.ne.s32.totalorder %s68, %s71
      %p80 = scmp.eq.s32.totalorder %s23, 1
      %p81 = por %p79, %p80
      %p82 = scmp.ne.s32.totalorder %s71, %s72
      %p83 = scmp.eq.s32.totalorder %s23, 0
      %p84 = por %p82, %p83
      %p85 = scmp.ne.s32.totalorder %s71, %s72
      %p86 = scmp.eq.s32.totalorder %s24, 1
      %p87 = por %p85, %p86
      %p89 = scmp.ne.s32.totalorder %s72, %s88
      %p90 = scmp.eq.s32.totalorder %s24, 0
      %p91 = por %p89, %p90
      %s92 = ssub.s32 %s25, %s37
      %p93 = scmp.eq.s32.totalorder %s92, 0
      %s95 = sadd.s32 %s94, 1
      %s96 = scalar_select %p93, %s94, %s95
      %p99 = pneg %p93
      %p100 = scmp.eq.s32.totalorder %s18, 1
      %p101 = por %p99, %p100
      %p102 = scmp.ne.s32.totalorder %s94, %s97
      %p103 = scmp.eq.s32.totalorder %s18, 0
      %p104 = por %p102, %p103
      %p105 = scmp.ne.s32.totalorder %s94, %s97
      %p106 = scmp.eq.s32.totalorder %s23, 1
      %p107 = por %p105, %p106
      %p108 = scmp.ne.s32.totalorder %s97, %s98
      %p109 = scmp.eq.s32.totalorder %s23, 0
      %p110 = por %p108, %p109
      %p111 = scmp.ne.s32.totalorder %s97, %s98
      %p112 = scmp.eq.s32.totalorder %s24, 1
      %p113 = por %p111, %p112
      %p115 = scmp.ne.s32.totalorder %s98, %s114
      %p116 = scmp.eq.s32.totalorder %s24, 0
      %p117 = por %p115, %p116
      %s119 = sadd.s32 %s118, 1
      %p122 = scmp.eq.s32.totalorder %s18, 1
      %p123 = scmp.ne.s32.totalorder %s118, %s120
      %p124 = scmp.eq.s32.totalorder %s18, 0
      %p125 = por %p123, %p124
      %p126 = scmp.ne.s32.totalorder %s118, %s120
      %p127 = scmp.eq.s32.totalorder %s23, 1
      %p128 = por %p126, %p127
      %p129 = scmp.ne.s32.totalorder %s120, %s121
      %p130 = scmp.eq.s32.totalorder %s23, 0
      %p131 = por %p129, %p130
      %p132 = scmp.ne.s32.totalorder %s120, %s121
      %p133 = scmp.eq.s32.totalorder %s24, 1
      %p134 = por %p132, %p133
      %p136 = scmp.ne.s32.totalorder %s121, %s135
      %p137 = scmp.eq.s32.totalorder %s24, 0
      %p138 = por %p136, %p137
      %s140 = sadd.s32 %s139, 1
      %p143 = scmp.eq.s32.totalorder %s18, 1
      %p144 = scmp.ne.s32.totalorder %s139, %s141
      %p145 = scmp.eq.s32.totalorder %s18, 0
      %p146 = por %p144, %p145
      %p147 = scmp.ne.s32.totalorder %s139, %s141
      %p148 = scmp.eq.s32.totalorder %s23, 1
      %p149 = por %p147, %p148
      %p150 = scmp.ne.s32.totalorder %s141, %s142
      %p151 = scmp.eq.s32.totalorder %s23, 0
      %p152 = por %p150, %p151
      %p153 = scmp.ne.s32.totalorder %s141, %s142
      %p154 = scmp.eq.s32.totalorder %s24, 1
      %p155 = por %p153, %p154
      %p157 = scmp.ne.s32.totalorder %s142, %s156
      %p158 = scmp.eq.s32.totalorder %s24, 0
      %p159 = por %p157, %p158
      %s161 = sadd.s32 %s160, 1
      %p164 = scmp.eq.s32.totalorder %s18, 1
      %p165 = scmp.ne.s32.totalorder %s160, %s162
      %p166 = scmp.eq.s32.totalorder %s18, 0
      %p167 = por %p165, %p166
      %p168 = scmp.ne.s32.totalorder %s160, %s162
      %p169 = scmp.eq.s32.totalorder %s23, 1
      %p170 = por %p168, %p169
      %p171 = scmp.ne.s32.totalorder %s162, %s163
      %p172 = scmp.eq.s32.totalorder %s23, 0
      %p173 = por %p171, %p172
      %p174 = scmp.ne.s32.totalorder %s162, %s163
      %p175 = scmp.eq.s32.totalorder %s24, 1
      %p176 = por %p174, %p175
      %p178 = scmp.ne.s32.totalorder %s163, %s177
      %p179 = scmp.eq.s32.totalorder %s24, 0
      %p180 = por %p178, %p179
      %s182 = sadd.s32 %s181, 1
      %p185 = scmp.eq.s32.totalorder %s18, 1
      %p186 = scmp.ne.s32.totalorder %s181, %s183
      %p187 = scmp.eq.s32.totalorder %s18, 0
      %p188 = por %p186, %p187
      %p189 = scmp.ne.s32.totalorder %s181, %s183
      %p190 = scmp.eq.s32.totalorder %s23, 1
      %p191 = por %p189, %p190
      %p192 = scmp.ne.s32.totalorder %s183, %s184
      %p193 = scmp.eq.s32.totalorder %s23, 0
      %p194 = por %p192, %p193
      %p195 = scmp.ne.s32.totalorder %s183, %s184
      %p196 = scmp.eq.s32.totalorder %s24, 1
      %p197 = por %p195, %p196
      %p199 = scmp.ne.s32.totalorder %s184, %s198
      %p200 = scmp.eq.s32.totalorder %s24, 0
      %p201 = por %p199, %p200
      %s203 = sadd.s32 %s202, 1
      %p206 = scmp.eq.s32.totalorder %s18, 1
      %p207 = scmp.ne.s32.totalorder %s202, %s204
      %p208 = scmp.eq.s32.totalorder %s18, 0
      %p209 = por %p207, %p208
      %p210 = scmp.ne.s32.totalorder %s202, %s204
      %p211 = scmp.eq.s32.totalorder %s23, 1
      %p212 = por %p210, %p211
      %p213 = scmp.ne.s32.totalorder %s204, %s205
      %p214 = scmp.eq.s32.totalorder %s23, 0
      %p215 = por %p213, %p214
      %p216 = scmp.ne.s32.totalorder %s204, %s205
      %p217 = scmp.eq.s32.totalorder %s24, 1
      %p218 = por %p216, %p217
      %p220 = scmp.ne.s32.totalorder %s205, %s219
      %p221 = scmp.eq.s32.totalorder %s24, 0
      %p222 = por %p220, %p221
      %s224 = sadd.s32 %s223, 1
      %p227 = scmp.eq.s32.totalorder %s18, 1
      %p228 = scmp.ne.s32.totalorder %s223, %s225
      %p229 = scmp.eq.s32.totalorder %s18, 0
      %p230 = por %p228, %p229
      %p231 = scmp.ne.s32.totalorder %s223, %s225
      %p232 = scmp.eq.s32.totalorder %s23, 1
      %p233 = por %p231, %p232
      %p234 = scmp.ne.s32.totalorder %s225, %s226
      %p235 = scmp.eq.s32.totalorder %s23, 0
      %p236 = por %p234, %p235
      %p237 = scmp.ne.s32.totalorder %s225, %s226
      %p238 = scmp.eq.s32.totalorder %s24, 1
      %p239 = por %p237, %p238
      %p241 = scmp.ne.s32.totalorder %s226, %s240
      %p242 = scmp.eq.s32.totalorder %s24, 0
      %p243 = por %p241, %p242
      %s244 = ssub.s32 %s25, %s37
      %s245 = ssub.s32 %s26, %s33
      %s246 = sor.u32 %s244, %s245
      %p247 = scmp.eq.s32.totalorder %s246, 0
      %s249 = sadd.s32 %s248, 1
      %s250 = scalar_select %p247, %s248, %s249
      %p253 = pneg %p247
      %p254 = scmp.eq.s32.totalorder %s18, 1
      %p255 = por %p253, %p254
      %p256 = scmp.ne.s32.totalorder %s248, %s251
      %p257 = scmp.eq.s32.totalorder %s18, 0
      %p258 = por %p256, %p257
      %p259 = scmp.ne.s32.totalorder %s248, %s251
      %p260 = scmp.eq.s32.totalorder %s23, 1
      %p261 = por %p259, %p260
      %p262 = scmp.ne.s32.totalorder %s251, %s252
      %p263 = scmp.eq.s32.totalorder %s23, 0
      %p264 = por %p262, %p263
      %p265 = scmp.ne.s32.totalorder %s251, %s252
      %p266 = scmp.eq.s32.totalorder %s24, 1
      %p267 = por %p265, %p266
      %p269 = scmp.ne.s32.totalorder %s252, %s268
      %p270 = scmp.eq.s32.totalorder %s24, 0
      %p271 = por %p269, %p270
      %p272 = scmp.le.s32.totalorder 1, %s18
      %p273 = scmp.lt.s32.totalorder %s18, 3
      %p274 = pnand %p272, %p273
      %p275 = pneg %p274
      // Predicated region
      $region9: #{tpu_custom_call.1} parent=5 // pred_check
        _
      $region10: #{tpu_custom_call.1} parent=5 // pred_check_branch
        %277 = sbr.rel (%p274) target = $region12
      $region11: #{tpu_custom_call.1} parent=5 // pred_region
        %s278 = ssub.s32 %s18, 1
        // Predicated region
        $region13: #{tpu_custom_call.1} parent=11 // pred_check
          %p279 = pneg %p131
        $region14: #{tpu_custom_call.1} parent=11 // pred_check_branch
          %281 = sbr.rel (%p279) target = $region16
        $region15: #{tpu_custom_call.1} parent=11 // pred_region
          _
        $region16: #{tpu_custom_call.1} parent=11 // pred_fallthru
          _
        // Predicated region
        $region17: #{tpu_custom_call.1} parent=11 // pred_check
          %p282 = pneg %p152
        $region18: #{tpu_custom_call.1} parent=11 // pred_check_branch
          %284 = sbr.rel (%p282) target = $region20
        $region19: #{tpu_custom_call.1} parent=11 // pred_region
          _
        $region20: #{tpu_custom_call.1} parent=11 // pred_fallthru
          _
        // Predicated region
        $region21: #{tpu_custom_call.1} parent=11 // pred_check
          %p285 = pneg %p173
        $region22: #{tpu_custom_call.1} parent=11 // pred_check_branch
          %287 = sbr.rel (%p285) target = $region24
        $region23: #{tpu_custom_call.1} parent=11 // pred_region
          _
        $region24: #{tpu_custom_call.1} parent=11 // pred_fallthru
          _
        // Predicated region
        $region25: #{tpu_custom_call.1} parent=11 // pred_check
          %p288 = pneg %p194
        $region26: #{tpu_custom_call.1} parent=11 // pred_check_branch
          %290 = sbr.rel (%p288) target = $region28
        $region27: #{tpu_custom_call.1} parent=11 // pred_region
          _
        $region28: #{tpu_custom_call.1} parent=11 // pred_fallthru
          _
        // Predicated region
        $region29: #{tpu_custom_call.1} parent=11 // pred_check
          %p291 = pneg %p215
        $region30: #{tpu_custom_call.1} parent=11 // pred_check_branch
          %293 = sbr.rel (%p291) target = $region32
        $region31: #{tpu_custom_call.1} parent=11 // pred_region
          _
        $region32: #{tpu_custom_call.1} parent=11 // pred_fallthru
          _
        // Predicated region
        $region33: #{tpu_custom_call.1} parent=11 // pred_check
          %p294 = pneg %p236
        $region34: #{tpu_custom_call.1} parent=11 // pred_check_branch
          %296 = sbr.rel (%p294) target = $region36
        $region35: #{tpu_custom_call.1} parent=11 // pred_region
          _
        $region36: #{tpu_custom_call.1} parent=11 // pred_fallthru
          _
      $region12: #{tpu_custom_call.1} parent=5 // pred_fallthru
        _
      %p297 = scmp.lt.s32.totalorder %s18, 2
      // Predicated region
      $region37: #{tpu_custom_call.1} parent=5 // pred_check
        %p298 = pneg %p297
      $region38: #{tpu_custom_call.1} parent=5 // pred_check_branch
        %300 = sbr.rel (%p298) target = $region40
      $region39: #{tpu_custom_call.1} parent=5 // pred_region
        // Predicated region
        $region41: #{tpu_custom_call.1} parent=39 // pred_check
          %p301 = pneg %p50
        $region42: #{tpu_custom_call.1} parent=39 // pred_check_branch
          %303 = sbr.rel (%p301) target = $region44
        $region43: #{tpu_custom_call.1} parent=39 // pred_region
          %p304 = scmp.lt.s32.totalorder %s25, 1
          %s305 = scalar_select %p304, %s25, 1
          %s306 = smul.addr %s305, 3
          %s307 = smul.addr %s306, 8
          %s308 = scalar_lea.vmem %s0, %s307
        $region44: #{tpu_custom_call.1} parent=39 // pred_fallthru
          _
        // Predicated region
        $region45: #{tpu_custom_call.1} parent=39 // pred_check
          %p309 = pneg %p78
        $region46: #{tpu_custom_call.1} parent=39 // pred_check_branch
          %311 = sbr.rel (%p309) target = $region48
        $region47: #{tpu_custom_call.1} parent=39 // pred_region
          %p312 = scmp.lt.s32.totalorder %s25, 1
          %s313 = scalar_select %p312, %s25, 1
          %p314 = scmp.lt.s32.totalorder %s26, 0
          %s315 = scalar_select %p314, %s26, 0
          %s316 = sadd.s32 %s315, %s313
          %s317 = smul.addr %s316, 4
          %s318 = scalar_lea.vmem %s1, %s317
        $region48: #{tpu_custom_call.1} parent=39 // pred_fallthru
          _
        // Predicated region
        $region49: #{tpu_custom_call.1} parent=39 // pred_check
          %p319 = pneg %p104
        $region50: #{tpu_custom_call.1} parent=39 // pred_check_branch
          %321 = sbr.rel (%p319) target = $region52
        $region51: #{tpu_custom_call.1} parent=39 // pred_region
          %p322 = scmp.lt.s32.totalorder %s25, 1
          %s323 = scalar_select %p322, %s25, 1
          %s324 = smul.addr %s323, 4
          %s325 = smul.addr %s324, 8
          %s326 = scalar_lea.vmem %s2, %s325
        $region52: #{tpu_custom_call.1} parent=39 // pred_fallthru
          _
      $region40: #{tpu_custom_call.1} parent=5 // pred_fallthru
        _
      %p327 = scmp.le.s32.totalorder 1, %s18
      %p328 = scmp.lt.s32.totalorder %s18, 3
      %p329 = pnand %p327, %p328
      %p330 = pneg %p329
      // Predicated region
      $region53: #{tpu_custom_call.1} parent=5 // pred_check
        _
      $region54: #{tpu_custom_call.1} parent=5 // pred_check_branch
        %332 = sbr.rel (%p329) target = $region56
      $region55: #{tpu_custom_call.1} parent=5 // pred_region
        %s333 = ssub.s32 %s18, 1
        %p334 = scmp.lt.s32.totalorder %s27, 1
        %s335 = scalar_select %p334, %s27, 1
        %s336 = smul.addr %s335, 3
        %s337 = smul.addr %s336, 8
        %s338 = scalar_lea.vmem %s0, %s337
        %p339 = pneg %p56
        %p340 = pneg %p53
        %p341 = scmp.lt.s32.totalorder %s27, 1
        %s342 = scalar_select %p341, %s27, 1
        %p343 = scmp.lt.s32.totalorder %s28, 0
        %s344 = scalar_select %p343, %s28, 0
        %s345 = sadd.s32 %s344, %s342
        %s346 = smul.addr %s345, 4
        %s347 = scalar_lea.vmem %s1, %s346
        %p348 = pneg %p84
        %p349 = pneg %p81
        %p350 = scmp.lt.s32.totalorder %s27, 1
        %s351 = scalar_select %p350, %s27, 1
        %s352 = smul.addr %s351, 4
        %s353 = smul.addr %s352, 8
        %s354 = scalar_lea.vmem %s2, %s353
        %p355 = pneg %p110
        %p356 = pneg %p107
        %p357 = pneg %p131
        %p358 = pneg %p128
        %p359 = pneg %p152
        %p360 = pneg %p149
        %p361 = pneg %p173
        %p362 = pneg %p170
        %p363 = pneg %p194
        %p364 = pneg %p191
        %p365 = pneg %p215
        %p366 = pneg %p212
        %p367 = pneg %p236
        %p368 = pneg %p233
        %p369 = pneg %p264
        %p370 = pneg %p261
        %s371 = sand.u32 %s251, 1
        %s372 = scalar_lea.sflag [#allocation4], %s371
        %s373 = sand.u32 %s251, 1
        %s374 = smul.addr %s373, 32
        %s375 = scalar_lea.vmem [#allocation3], %s374
        %p376 = scmp.lt.s32.totalorder %s27, 1
        %s377 = scalar_select %p376, %s27, 1
        %s378 = smul.addr %s377, 3
        %s379 = smul.addr %s378, 8
        %s380 = scalar_lea.vmem %s0, %s379
        %p381 = scmp.lt.s32.totalorder %s27, 1
        %s382 = scalar_select %p381, %s27, 1
        %p383 = scmp.lt.s32.totalorder %s28, 0
        %s384 = scalar_select %p383, %s28, 0
        %s385 = sadd.s32 %s384, %s382
        %s386 = smul.addr %s385, 4
        %s387 = scalar_lea.vmem %s1, %s386
        %p388 = scmp.lt.s32.totalorder %s27, 1
        %s389 = scalar_select %p388, %s27, 1
        %s390 = smul.addr %s389, 4
        %s391 = smul.addr %s390, 8
        %s392 = scalar_lea.vmem %s2, %s391
        %v393 = vld [vmem:[%s380] sm:$0xff]
        %v394 = vld [vmem:[%s380 + $0x8] sm:$0xff]
        %v395 = vld [vmem:[%s380 + $0x10] sm:$0xff]
        %v396 = vld [vmem:[%s387] sm:$0x7]
        %v397 = vld [vmem:[%s392] sm:$0xff]
        %v398 = vld [vmem:[%s392 + $0x8] sm:$0xff]
        %v399 = vld [vmem:[%s392 + $0x10] sm:$0xff]
        %v400 = vld [vmem:[%s392 + $0x18] sm:$0xff]
        %v401 = vld [vmem:[%s3] sm:$0xff]
        %v402 = vld [vmem:[%s3 + $0x8] sm:$0xff]
        %v403 = vld [vmem:[%s3 + $0x10] sm:$0xff]
        %v404 = vld [vmem:[%s3 + $0x18] sm:$0xff]
        %v405 = vld [vmem:[%s4] sm:$0xff]
        %v406 = vld [vmem:[%s4 + $0x8] sm:$0xff]
        %v407 = vld [vmem:[%s4 + $0x10] sm:$0xff]
        %v408 = vld [vmem:[%s4 + $0x18] sm:$0xff]
        %v409 = vmul.f32 %v393, %v393
        %v410 = vmul.f32 %v394, %v394
        %v411 = vmul.f32 %v395, %v395
        %415 = vrot.lane.b32.xlu0 %v409, 127
        %v416 = vpop.permute.xlu0 %415
        %417 = vrot.lane.b32.xlu0 %v410, 127
        %v418 = vpop.permute.xlu0 %417
        %419 = vrot.lane.b32.xlu0 %v411, 127
        %v420 = vpop.permute.xlu0 %419
        %v424 = vadd.f32 %v409, %v416
        %v425 = vadd.f32 %v410, %v418
        %v426 = vadd.f32 %v411, %v420
        %427 = vrot.lane.b32.xlu0 %v409, 126
        %v428 = vpop.permute.xlu0 %427
        %429 = vrot.lane.b32.xlu0 %v410, 126
        %v430 = vpop.permute.xlu0 %429
        %431 = vrot.lane.b32.xlu0 %v411, 126
        %v432 = vpop.permute.xlu0 %431
        %v436 = vadd.f32 %v424, %v428
        %v437 = vadd.f32 %v425, %v430
        %v438 = vadd.f32 %v426, %v432
        %v439 = vmul.f32 %v396, %v396
        %v441 = vrot.slane %v439, 1
        %v443 = vadd.f32 %v439, %v441
        %v444 = vrot.slane %v439, 2
        %v446 = vadd.f32 %v443, %v444
        %448 = vset.pattern.permute.xlu0 0
        %449 = vperm.xlu0 %448, %v393
        %v450 = vpop.permute.xlu0 %449
        %453 = vset.pattern.permute.xlu0 0
        %454 = vperm.xlu0 %453, %v394
        %v455 = vpop.permute.xlu0 %454
        %458 = vset.pattern.permute.xlu0 0
        %459 = vperm.xlu0 %458, %v395
        %v460 = vpop.permute.xlu0 %459
        %v462 = vlaneseq
        %v463 = vshrl.u32 %v462, 7
        %v464 = vsub.s32 0, %v463
        %v465 = vrot.slane %v396, %v464
        %v466 = vmul.f32 %v450, %v465
        %v467 = vmul.f32 %v455, %v465
        %v468 = vmul.f32 %v460, %v465
        %469 = vset.pattern.permute.xlu0 1
        %470 = vperm.xlu0 %469, %v393
        %v471 = vpop.permute.xlu0 %470
        %473 = vset.pattern.permute.xlu0 1
        %474 = vperm.xlu0 %473, %v394
        %v475 = vpop.permute.xlu0 %474
        %477 = vset.pattern.permute.xlu0 1
        %478 = vperm.xlu0 %477, %v395
        %v479 = vpop.permute.xlu0 %478
        %v481 = vlaneseq
        %v482 = vshrl.u32 %v481, 7
        %v483 = vsub.s32 1, %v482
        %v484 = vrot.slane %v396, %v483
        %v485 = vmul.f32 %v471, %v484
        %v486 = vmul.f32 %v475, %v484
        %v487 = vmul.f32 %v479, %v484
        %v488 = vadd.f32 %v466, %v485
        %v489 = vadd.f32 %v467, %v486
        %v490 = vadd.f32 %v468, %v487
        %491 = vset.pattern.permute.xlu0 2
        %492 = vperm.xlu0 %491, %v393
        %v493 = vpop.permute.xlu0 %492
        %495 = vset.pattern.permute.xlu0 2
        %496 = vperm.xlu0 %495, %v394
        %v497 = vpop.permute.xlu0 %496
        %499 = vset.pattern.permute.xlu0 2
        %500 = vperm.xlu0 %499, %v395
        %v501 = vpop.permute.xlu0 %500
        %v503 = vlaneseq
        %v504 = vshrl.u32 %v503, 7
        %v505 = vsub.s32 2, %v504
        %v506 = vrot.slane %v396, %v505
        %v507 = vmul.f32 %v493, %v506
        %v508 = vmul.f32 %v497, %v506
        %v509 = vmul.f32 %v501, %v506
        %v510 = vadd.f32 %v488, %v507
        %v511 = vadd.f32 %v489, %v508
        %v512 = vadd.f32 %v490, %v509
        %514 = vset.pattern.permute.xlu0 0
        %515 = vperm.xlu0 %514, %v436
        %v516 = vpop.permute.xlu0 %515
        %519 = vset.pattern.permute.xlu0 0
        %520 = vperm.xlu0 %519, %v437
        %v521 = vpop.permute.xlu0 %520
        %524 = vset.pattern.permute.xlu0 0
        %525 = vperm.xlu0 %524, %v438
        %v526 = vpop.permute.xlu0 %525
        %v528 = vlaneseq
        %v529 = vshrl.u32 %v528, 7
        %v530 = vsub.s32 0, %v529
        %v531 = vrot.slane %v446, %v530
        %v532 = vadd.f32 %v516, %v531
        %v533 = vadd.f32 %v521, %v531
        %v534 = vadd.f32 %v526, %v531
        %v535 = vmul.f32 %v510, 2.0
        %v536 = vmul.f32 %v511, 2.0
        %v537 = vmul.f32 %v512, 2.0
        %v538 = vsub.f32 %v532, %v535
        %v539 = vsub.f32 %v533, %v536
        %v540 = vsub.f32 %v534, %v537
        %v541 = vmax.f32 %v538, 0.0
        %v542 = vmax.f32 %v539, 0.0
        %v543 = vmax.f32 %v540, 0.0
        %v544 = vlaneseq
        %v545 = vshrl.u32 %v544, 7
        %v546 = vadd.s32 %v545, 8
        %v547 = vadd.s32 %v545, 16
        %v551 = vand.u32 %v541, 4294967264
        %v552 = vand.u32 %v542, 4294967264
        %v553 = vand.u32 %v543, 4294967264
        %v554 = vor.u32 %v551, %v545
        %v555 = vor.u32 %v552, %v546
        %v556 = vor.u32 %v553, %v547
        %vm557 = vcmp.lt.s32.totalorder %v554, %v555
        %v558 = vsel %vm557, %v554, %v555
        %vm559 = vcmp.lt.s32.totalorder %v558, %v556
        %v560 = vsel %vm559, %v558, %v556
        %v561 = vrot.slane %v560, 4
        %vm562 = vcmp.lt.s32.totalorder %v560, %v561
        %v563 = vsel %vm562, %v560, %v561
        %v564 = vrot.slane %v563, 2
        %vm565 = vcmp.lt.s32.totalorder %v563, %v564
        %v566 = vsel %vm565, %v563, %v564
        %v567 = vrot.slane %v566, 1
        %vm568 = vcmp.lt.s32.totalorder %v566, %v567
        %v569 = vsel %vm568, %v566, %v567
        %vm570 = vcmp.eq.s32.totalorder %v554, %v569
        %vm571 = vcmp.eq.s32.totalorder %v555, %v569
        %vm572 = vcmp.eq.s32.totalorder %v556, %v569
        %v573 = vsel %vm570, 1, 0
        %v574 = vsel %vm571, 1, 0
        %v575 = vsel %vm572, 1, 0
        %v576 = vcvt.s32.f32 %v573
        %v577 = vcvt.s32.f32 %v574
        %v578 = vcvt.s32.f32 %v575
        %v579 = vmul.f32 %v541, %v576
        %v580 = vmul.f32 %v542, %v577
        %v581 = vmul.f32 %v543, %v578
        %v582 = vadd.f32 %v579, %v580
        %v583 = vadd.f32 %v582, %v581
        %v584 = vrot.slane %v583, 4
        %v585 = vadd.f32 %v583, %v584
        %v586 = vrot.slane %v585, 2
        %v587 = vadd.f32 %v585, %v586
        %v588 = vrot.slane %v587, 1
        %v589 = vadd.f32 %v587, %v588
        %v590 = vmax.f32 %v589, 0.0
        %v591 = vrsqrt.pop %v590
        %v592 = vmul.f32 %v590, %v591
        %vm593 = vcmp.eq.f32.partialorder %v590, inf
        %v594 = vsel %vm593, %v590, %v592
        %vm595 = vcmp.eq.f32.partialorder %v590, 0.0
        %v596 = vand.u32 %v590, 2147483648
        %v597 = vsel %vm595, %v596, %v594
        %598 = vst [vmem:[#allocation2] sm:$0xff] %v576
        %599 = vst [vmem:[#allocation2 + $0x40] sm:$0xff] %v577
        %600 = vst [vmem:[#allocation2 + $0x80] sm:$0xff] %v578
        %vm601 = vcmp.le.s32.totalorder %v554, %v569
        %vm602 = vcmp.le.s32.totalorder %v555, %v569
        %vm603 = vcmp.le.s32.totalorder %v556, %v569
        %v604 = vsel %vm601, 2147483647, %v554
        %v605 = vsel %vm602, 2147483647, %v555
        %v606 = vsel %vm603, 2147483647, %v556
        %vm607 = vcmp.lt.s32.totalorder %v604, %v605
        %v608 = vsel %vm607, %v604, %v605
        %vm609 = vcmp.lt.s32.totalorder %v608, %v606
        %v610 = vsel %vm609, %v608, %v606
        %v611 = vrot.slane %v610, 4
        %vm612 = vcmp.lt.s32.totalorder %v610, %v611
        %v613 = vsel %vm612, %v610, %v611
        %v614 = vrot.slane %v613, 2
        %vm615 = vcmp.lt.s32.totalorder %v613, %v614
        %v616 = vsel %vm615, %v613, %v614
        %v617 = vrot.slane %v616, 1
        %vm618 = vcmp.lt.s32.totalorder %v616, %v617
        %v619 = vsel %vm618, %v616, %v617
        %vm620 = vcmp.eq.s32.totalorder %v554, %v619
        %vm621 = vcmp.eq.s32.totalorder %v555, %v619
        %vm622 = vcmp.eq.s32.totalorder %v556, %v619
        %v623 = vsel %vm620, 1, 0
        %v624 = vsel %vm621, 1, 0
        %v625 = vsel %vm622, 1, 0
        %v626 = vcvt.s32.f32 %v623
        %v627 = vcvt.s32.f32 %v624
        %v628 = vcvt.s32.f32 %v625
        %v629 = vmul.f32 %v541, %v626
        %v630 = vmul.f32 %v542, %v627
        %v631 = vmul.f32 %v543, %v628
        %v632 = vadd.f32 %v629, %v630
        %v633 = vadd.f32 %v632, %v631
        %v634 = vrot.slane %v633, 4
        %v635 = vadd.f32 %v633, %v634
        %v636 = vrot.slane %v635, 2
        %v637 = vadd.f32 %v635, %v636
        %v638 = vrot.slane %v637, 1
        %v639 = vadd.f32 %v637, %v638
        %v640 = vmax.f32 %v639, 0.0
        %v641 = vrsqrt.pop %v640
        %v642 = vmul.f32 %v640, %v641
        %vm643 = vcmp.eq.f32.partialorder %v640, inf
        %v644 = vsel %vm643, %v640, %v642
        %vm645 = vcmp.eq.f32.partialorder %v640, 0.0
        %v646 = vand.u32 %v640, 2147483648
        %v647 = vsel %vm645, %v646, %v644
        %648 = vst [vmem:[#allocation2 + $0x8] sm:$0xff] %v626
        %649 = vst [vmem:[#allocation2 + $0x48] sm:$0xff] %v627
        %650 = vst [vmem:[#allocation2 + $0x88] sm:$0xff] %v628
        %vm651 = vcmp.le.s32.totalorder %v554, %v619
        %vm652 = vcmp.le.s32.totalorder %v555, %v619
        %vm653 = vcmp.le.s32.totalorder %v556, %v619
        %v654 = vsel %vm651, 2147483647, %v554
        %v655 = vsel %vm652, 2147483647, %v555
        %v656 = vsel %vm653, 2147483647, %v556
        %vm657 = vcmp.lt.s32.totalorder %v654, %v655
        %v658 = vsel %vm657, %v654, %v655
        %vm659 = vcmp.lt.s32.totalorder %v658, %v656
        %v660 = vsel %vm659, %v658, %v656
        %v661 = vrot.slane %v660, 4
        %vm662 = vcmp.lt.s32.totalorder %v660, %v661
        %v663 = vsel %vm662, %v660, %v661
        %v664 = vrot.slane %v663, 2
        %vm665 = vcmp.lt.s32.totalorder %v663, %v664
        %v666 = vsel %vm665, %v663, %v664
        %v667 = vrot.slane %v666, 1
        %vm668 = vcmp.lt.s32.totalorder %v666, %v667
        %v669 = vsel %vm668, %v666, %v667
        %vm670 = vcmp.eq.s32.totalorder %v554, %v669
        %vm671 = vcmp.eq.s32.totalorder %v555, %v669
        %vm672 = vcmp.eq.s32.totalorder %v556, %v669
        %v673 = vsel %vm670, 1, 0
        %v674 = vsel %vm671, 1, 0
        %v675 = vsel %vm672, 1, 0
        %v676 = vcvt.s32.f32 %v673
        %v677 = vcvt.s32.f32 %v674
        %v678 = vcvt.s32.f32 %v675
        %v679 = vmul.f32 %v541, %v676
        %v680 = vmul.f32 %v542, %v677
        %v681 = vmul.f32 %v543, %v678
        %v682 = vadd.f32 %v679, %v680
        %v683 = vadd.f32 %v682, %v681
        %v684 = vrot.slane %v683, 4
        %v685 = vadd.f32 %v683, %v684
        %v686 = vrot.slane %v685, 2
        %v687 = vadd.f32 %v685, %v686
        %v688 = vrot.slane %v687, 1
        %v689 = vadd.f32 %v687, %v688
        %v690 = vmax.f32 %v689, 0.0
        %v691 = vrsqrt.pop %v690
        %v692 = vmul.f32 %v690, %v691
        %vm693 = vcmp.eq.f32.partialorder %v690, inf
        %v694 = vsel %vm693, %v690, %v692
        %vm695 = vcmp.eq.f32.partialorder %v690, 0.0
        %v696 = vand.u32 %v690, 2147483648
        %v697 = vsel %vm695, %v696, %v694
        %698 = vst [vmem:[#allocation2 + $0x10] sm:$0xff] %v676
        %699 = vst [vmem:[#allocation2 + $0x50] sm:$0xff] %v677
        %700 = vst [vmem:[#allocation2 + $0x90] sm:$0xff] %v678
        %vm701 = vcmp.le.s32.totalorder %v554, %v669
        %vm702 = vcmp.le.s32.totalorder %v555, %v669
        %vm703 = vcmp.le.s32.totalorder %v556, %v669
        %v704 = vsel %vm701, 2147483647, %v554
        %v705 = vsel %vm702, 2147483647, %v555
        %v706 = vsel %vm703, 2147483647, %v556
        %vm707 = vcmp.lt.s32.totalorder %v704, %v705
        %v708 = vsel %vm707, %v704, %v705
        %vm709 = vcmp.lt.s32.totalorder %v708, %v706
        %v710 = vsel %vm709, %v708, %v706
        %v711 = vrot.slane %v710, 4
        %vm712 = vcmp.lt.s32.totalorder %v710, %v711
        %v713 = vsel %vm712, %v710, %v711
        %v714 = vrot.slane %v713, 2
        %vm715 = vcmp.lt.s32.totalorder %v713, %v714
        %v716 = vsel %vm715, %v713, %v714
        %v717 = vrot.slane %v716, 1
        %vm718 = vcmp.lt.s32.totalorder %v716, %v717
        %v719 = vsel %vm718, %v716, %v717
        %vm720 = vcmp.eq.s32.totalorder %v554, %v719
        %vm721 = vcmp.eq.s32.totalorder %v555, %v719
        %vm722 = vcmp.eq.s32.totalorder %v556, %v719
        %v723 = vsel %vm720, 1, 0
        %v724 = vsel %vm721, 1, 0
        %v725 = vsel %vm722, 1, 0
        %v726 = vcvt.s32.f32 %v723
        %v727 = vcvt.s32.f32 %v724
        %v728 = vcvt.s32.f32 %v725
        %v729 = vmul.f32 %v541, %v726
        %v730 = vmul.f32 %v542, %v727
        %v731 = vmul.f32 %v543, %v728
        %v732 = vadd.f32 %v729, %v730
        %v733 = vadd.f32 %v732, %v731
        %v734 = vrot.slane %v733, 4
        %v735 = vadd.f32 %v733, %v734
        %v736 = vrot.slane %v735, 2
        %v737 = vadd.f32 %v735, %v736
        %v738 = vrot.slane %v737, 1
        %v739 = vadd.f32 %v737, %v738
        %v740 = vmax.f32 %v739, 0.0
        %v741 = vrsqrt.pop %v740
        %v742 = vmul.f32 %v740, %v741
        %vm743 = vcmp.eq.f32.partialorder %v740, inf
        %v744 = vsel %vm743, %v740, %v742
        %vm745 = vcmp.eq.f32.partialorder %v740, 0.0
        %v746 = vand.u32 %v740, 2147483648
        %v747 = vsel %vm745, %v746, %v744
        %748 = vst [vmem:[#allocation2 + $0x18] sm:$0xff] %v726
        %749 = vst [vmem:[#allocation2 + $0x58] sm:$0xff] %v727
        %750 = vst [vmem:[#allocation2 + $0x98] sm:$0xff] %v728
        %vm751 = vcmp.le.s32.totalorder %v554, %v719
        %vm752 = vcmp.le.s32.totalorder %v555, %v719
        %vm753 = vcmp.le.s32.totalorder %v556, %v719
        %v754 = vsel %vm751, 2147483647, %v554
        %v755 = vsel %vm752, 2147483647, %v555
        %v756 = vsel %vm753, 2147483647, %v556
        %vm757 = vcmp.lt.s32.totalorder %v754, %v755
        %v758 = vsel %vm757, %v754, %v755
        %vm759 = vcmp.lt.s32.totalorder %v758, %v756
        %v760 = vsel %vm759, %v758, %v756
        %v761 = vrot.slane %v760, 4
        %vm762 = vcmp.lt.s32.totalorder %v760, %v761
        %v763 = vsel %vm762, %v760, %v761
        %v764 = vrot.slane %v763, 2
        %vm765 = vcmp.lt.s32.totalorder %v763, %v764
        %v766 = vsel %vm765, %v763, %v764
        %v767 = vrot.slane %v766, 1
        %vm768 = vcmp.lt.s32.totalorder %v766, %v767
        %v769 = vsel %vm768, %v766, %v767
        %vm770 = vcmp.eq.s32.totalorder %v554, %v769
        %vm771 = vcmp.eq.s32.totalorder %v555, %v769
        %vm772 = vcmp.eq.s32.totalorder %v556, %v769
        %v773 = vsel %vm770, 1, 0
        %v774 = vsel %vm771, 1, 0
        %v775 = vsel %vm772, 1, 0
        %v776 = vcvt.s32.f32 %v773
        %v777 = vcvt.s32.f32 %v774
        %v778 = vcvt.s32.f32 %v775
        %v779 = vmul.f32 %v541, %v776
        %v780 = vmul.f32 %v542, %v777
        %v781 = vmul.f32 %v543, %v778
        %v782 = vadd.f32 %v779, %v780
        %v783 = vadd.f32 %v782, %v781
        %v784 = vrot.slane %v783, 4
        %v785 = vadd.f32 %v783, %v784
        %v786 = vrot.slane %v785, 2
        %v787 = vadd.f32 %v785, %v786
        %v788 = vrot.slane %v787, 1
        %v789 = vadd.f32 %v787, %v788
        %v790 = vmax.f32 %v789, 0.0
        %v791 = vrsqrt.pop %v790
        %v792 = vmul.f32 %v790, %v791
        %vm793 = vcmp.eq.f32.partialorder %v790, inf
        %v794 = vsel %vm793, %v790, %v792
        %vm795 = vcmp.eq.f32.partialorder %v790, 0.0
        %v796 = vand.u32 %v790, 2147483648
        %v797 = vsel %vm795, %v796, %v794
        %798 = vst [vmem:[#allocation2 + $0x20] sm:$0xff] %v776
        %799 = vst [vmem:[#allocation2 + $0x60] sm:$0xff] %v777
        %800 = vst [vmem:[#allocation2 + $0xa0] sm:$0xff] %v778
        %vm801 = vcmp.le.s32.totalorder %v554, %v769
        %vm802 = vcmp.le.s32.totalorder %v555, %v769
        %vm803 = vcmp.le.s32.totalorder %v556, %v769
        %v804 = vsel %vm801, 2147483647, %v554
        %v805 = vsel %vm802, 2147483647, %v555
        %v806 = vsel %vm803, 2147483647, %v556
        %vm807 = vcmp.lt.s32.totalorder %v804, %v805
        %v808 = vsel %vm807, %v804, %v805
        %vm809 = vcmp.lt.s32.totalorder %v808, %v806
        %v810 = vsel %vm809, %v808, %v806
        %v811 = vrot.slane %v810, 4
        %vm812 = vcmp.lt.s32.totalorder %v810, %v811
        %v813 = vsel %vm812, %v810, %v811
        %v814 = vrot.slane %v813, 2
        %vm815 = vcmp.lt.s32.totalorder %v813, %v814
        %v816 = vsel %vm815, %v813, %v814
        %v817 = vrot.slane %v816, 1
        %vm818 = vcmp.lt.s32.totalorder %v816, %v817
        %v819 = vsel %vm818, %v816, %v817
        %vm820 = vcmp.eq.s32.totalorder %v554, %v819
        %vm821 = vcmp.eq.s32.totalorder %v555, %v819
        %vm822 = vcmp.eq.s32.totalorder %v556, %v819
        %v823 = vsel %vm820, 1, 0
        %v824 = vsel %vm821, 1, 0
        %v825 = vsel %vm822, 1, 0
        %v826 = vcvt.s32.f32 %v823
        %v827 = vcvt.s32.f32 %v824
        %v828 = vcvt.s32.f32 %v825
        %v829 = vmul.f32 %v541, %v826
        %v830 = vmul.f32 %v542, %v827
        %v831 = vmul.f32 %v543, %v828
        %v832 = vadd.f32 %v829, %v830
        %v833 = vadd.f32 %v832, %v831
        %v834 = vrot.slane %v833, 4
        %v835 = vadd.f32 %v833, %v834
        %v836 = vrot.slane %v835, 2
        %v837 = vadd.f32 %v835, %v836
        %v838 = vrot.slane %v837, 1
        %v839 = vadd.f32 %v837, %v838
        %v840 = vmax.f32 %v839, 0.0
        %v841 = vrsqrt.pop %v840
        %v842 = vmul.f32 %v840, %v841
        %vm843 = vcmp.eq.f32.partialorder %v840, inf
        %v844 = vsel %vm843, %v840, %v842
        %vm845 = vcmp.eq.f32.partialorder %v840, 0.0
        %v846 = vand.u32 %v840, 2147483648
        %v847 = vsel %vm845, %v846, %v844
        %848 = vst [vmem:[#allocation2 + $0x28] sm:$0xff] %v826
        %849 = vst [vmem:[#allocation2 + $0x68] sm:$0xff] %v827
        %850 = vst [vmem:[#allocation2 + $0xa8] sm:$0xff] %v828
        %vm851 = vcmp.le.s32.totalorder %v554, %v819
        %vm852 = vcmp.le.s32.totalorder %v555, %v819
        %vm853 = vcmp.le.s32.totalorder %v556, %v819
        %v854 = vsel %vm851, 2147483647, %v554
        %v855 = vsel %vm852, 2147483647, %v555
        %v856 = vsel %vm853, 2147483647, %v556
        %vm857 = vcmp.lt.s32.totalorder %v854, %v855
        %v858 = vsel %vm857, %v854, %v855
        %vm859 = vcmp.lt.s32.totalorder %v858, %v856
        %v860 = vsel %vm859, %v858, %v856
        %v861 = vrot.slane %v860, 4
        %vm862 = vcmp.lt.s32.totalorder %v860, %v861
        %v863 = vsel %vm862, %v860, %v861
        %v864 = vrot.slane %v863, 2
        %vm865 = vcmp.lt.s32.totalorder %v863, %v864
        %v866 = vsel %vm865, %v863, %v864
        %v867 = vrot.slane %v866, 1
        %vm868 = vcmp.lt.s32.totalorder %v866, %v867
        %v869 = vsel %vm868, %v866, %v867
        %vm870 = vcmp.eq.s32.totalorder %v554, %v869
        %vm871 = vcmp.eq.s32.totalorder %v555, %v869
        %vm872 = vcmp.eq.s32.totalorder %v556, %v869
        %v873 = vsel %vm870, 1, 0
        %v874 = vsel %vm871, 1, 0
        %v875 = vsel %vm872, 1, 0
        %v876 = vcvt.s32.f32 %v873
        %v877 = vcvt.s32.f32 %v874
        %v878 = vcvt.s32.f32 %v875
        %v879 = vmul.f32 %v541, %v876
        %v880 = vmul.f32 %v542, %v877
        %v881 = vmul.f32 %v543, %v878
        %v882 = vadd.f32 %v879, %v880
        %v883 = vadd.f32 %v882, %v881
        %v884 = vrot.slane %v883, 4
        %v885 = vadd.f32 %v883, %v884
        %v886 = vrot.slane %v885, 2
        %v887 = vadd.f32 %v885, %v886
        %v888 = vrot.slane %v887, 1
        %v889 = vadd.f32 %v887, %v888
        %v890 = vmax.f32 %v889, 0.0
        %v891 = vrsqrt.pop %v890
        %v892 = vmul.f32 %v890, %v891
        %vm893 = vcmp.eq.f32.partialorder %v890, inf
        %v894 = vsel %vm893, %v890, %v892
        %vm895 = vcmp.eq.f32.partialorder %v890, 0.0
        %v896 = vand.u32 %v890, 2147483648
        %v897 = vsel %vm895, %v896, %v894
        %898 = vst [vmem:[#allocation2 + $0x30] sm:$0xff] %v876
        %899 = vst [vmem:[#allocation2 + $0x70] sm:$0xff] %v877
        %900 = vst [vmem:[#allocation2 + $0xb0] sm:$0xff] %v878
        %vm901 = vcmp.le.s32.totalorder %v554, %v869
        %vm902 = vcmp.le.s32.totalorder %v555, %v869
        %vm903 = vcmp.le.s32.totalorder %v556, %v869
        %v904 = vsel %vm901, 2147483647, %v554
        %v905 = vsel %vm902, 2147483647, %v555
        %v906 = vsel %vm903, 2147483647, %v556
        %vm907 = vcmp.lt.s32.totalorder %v904, %v905
        %v908 = vsel %vm907, %v904, %v905
        %vm909 = vcmp.lt.s32.totalorder %v908, %v906
        %v910 = vsel %vm909, %v908, %v906
        %v911 = vrot.slane %v910, 4
        %vm912 = vcmp.lt.s32.totalorder %v910, %v911
        %v913 = vsel %vm912, %v910, %v911
        %v914 = vrot.slane %v913, 2
        %vm915 = vcmp.lt.s32.totalorder %v913, %v914
        %v916 = vsel %vm915, %v913, %v914
        %v917 = vrot.slane %v916, 1
        %vm918 = vcmp.lt.s32.totalorder %v916, %v917
        %v919 = vsel %vm918, %v916, %v917
        %vm920 = vcmp.eq.s32.totalorder %v554, %v919
        %vm921 = vcmp.eq.s32.totalorder %v555, %v919
        %vm922 = vcmp.eq.s32.totalorder %v556, %v919
        %v923 = vsel %vm920, 1, 0
        %v924 = vsel %vm921, 1, 0
        %v925 = vsel %vm922, 1, 0
        %v926 = vcvt.s32.f32 %v923
        %v927 = vcvt.s32.f32 %v924
        %v928 = vcvt.s32.f32 %v925
        %v929 = vmul.f32 %v541, %v926
        %v930 = vmul.f32 %v542, %v927
        %v931 = vmul.f32 %v543, %v928
        %v932 = vadd.f32 %v929, %v930
        %v933 = vadd.f32 %v932, %v931
        %v934 = vrot.slane %v933, 4
        %v935 = vadd.f32 %v933, %v934
        %v936 = vrot.slane %v935, 2
        %v937 = vadd.f32 %v935, %v936
        %v938 = vrot.slane %v937, 1
        %v939 = vadd.f32 %v937, %v938
        %v940 = vmax.f32 %v939, 0.0
        %v941 = vrsqrt.pop %v940
        %v942 = vmul.f32 %v940, %v941
        %vm943 = vcmp.eq.f32.partialorder %v940, inf
        %v944 = vsel %vm943, %v940, %v942
        %vm945 = vcmp.eq.f32.partialorder %v940, 0.0
        %v946 = vand.u32 %v940, 2147483648
        %v947 = vsel %vm945, %v946, %v944
        %948 = vst [vmem:[#allocation2 + $0x38] sm:$0xff] %v926
        %949 = vst [vmem:[#allocation2 + $0x78] sm:$0xff] %v927
        %950 = vst [vmem:[#allocation2 + $0xb8] sm:$0xff] %v928
        %v951 = vld [vmem:[#allocation2] sm:$0xff]
        %v952 = vld [vmem:[#allocation2 + $0x8] sm:$0xff]
        %v953 = vld [vmem:[#allocation2 + $0x10] sm:$0xff]
        %v954 = vld [vmem:[#allocation2 + $0x18] sm:$0xff]
        %v955 = vld [vmem:[#allocation2 + $0x20] sm:$0xff]
        %v956 = vld [vmem:[#allocation2 + $0x28] sm:$0xff]
        %v957 = vld [vmem:[#allocation2 + $0x30] sm:$0xff]
        %v958 = vld [vmem:[#allocation2 + $0x38] sm:$0xff]
        %v959 = vld [vmem:[#allocation2 + $0x40] sm:$0xff]
        %v960 = vld [vmem:[#allocation2 + $0x48] sm:$0xff]
        %v961 = vld [vmem:[#allocation2 + $0x50] sm:$0xff]
        %v962 = vld [vmem:[#allocation2 + $0x58] sm:$0xff]
        %v963 = vld [vmem:[#allocation2 + $0x60] sm:$0xff]
        %v964 = vld [vmem:[#allocation2 + $0x68] sm:$0xff]
        %v965 = vld [vmem:[#allocation2 + $0x70] sm:$0xff]
        %v966 = vld [vmem:[#allocation2 + $0x78] sm:$0xff]
        %v967 = vld [vmem:[#allocation2 + $0x80] sm:$0xff]
        %v968 = vld [vmem:[#allocation2 + $0x88] sm:$0xff]
        %v969 = vld [vmem:[#allocation2 + $0x90] sm:$0xff]
        %v970 = vld [vmem:[#allocation2 + $0x98] sm:$0xff]
        %v971 = vld [vmem:[#allocation2 + $0xa0] sm:$0xff]
        %v972 = vld [vmem:[#allocation2 + $0xa8] sm:$0xff]
        %v973 = vld [vmem:[#allocation2 + $0xb0] sm:$0xff]
        %v974 = vld [vmem:[#allocation2 + $0xb8] sm:$0xff]
        %976 = vset.pattern.permute.xlu0 0
        %977 = vperm.xlu0 %976, %v401
        %v978 = vpop.permute.xlu0 %977
        %981 = vset.pattern.permute.xlu0 0
        %982 = vperm.xlu0 %981, %v402
        %v983 = vpop.permute.xlu0 %982
        %986 = vset.pattern.permute.xlu0 0
        %987 = vperm.xlu0 %986, %v403
        %v988 = vpop.permute.xlu0 %987
        %991 = vset.pattern.permute.xlu0 0
        %992 = vperm.xlu0 %991, %v404
        %v993 = vpop.permute.xlu0 %992
        %v995 = vlaneseq
        %v996 = vshrl.u32 %v995, 7
        %v997 = vsub.s32 0, %v996
        %v998 = vrot.slane %v597, %v997
        %v999 = vlaneseq
        %v1000 = vshrl.u32 %v999, 7
        %v1001 = vsub.s32 0, %v1000
        %v1002 = vrot.slane %v647, %v1001
        %v1003 = vlaneseq
        %v1004 = vshrl.u32 %v1003, 7
        %v1005 = vsub.s32 0, %v1004
        %v1006 = vrot.slane %v697, %v1005
        %v1007 = vlaneseq
        %v1008 = vshrl.u32 %v1007, 7
        %v1009 = vsub.s32 0, %v1008
        %v1010 = vrot.slane %v747, %v1009
        %v1011 = vlaneseq
        %v1012 = vshrl.u32 %v1011, 7
        %v1013 = vsub.s32 0, %v1012
        %v1014 = vrot.slane %v797, %v1013
        %v1015 = vlaneseq
        %v1016 = vshrl.u32 %v1015, 7
        %v1017 = vsub.s32 0, %v1016
        %v1018 = vrot.slane %v847, %v1017
        %v1019 = vlaneseq
        %v1020 = vshrl.u32 %v1019, 7
        %v1021 = vsub.s32 0, %v1020
        %v1022 = vrot.slane %v897, %v1021
        %v1023 = vlaneseq
        %v1024 = vshrl.u32 %v1023, 7
        %v1025 = vsub.s32 0, %v1024
        %v1026 = vrot.slane %v947, %v1025
        %v1027 = vmul.f32 %v978, %v998
        %v1028 = vmul.f32 %v978, %v1002
        %v1029 = vmul.f32 %v978, %v1006
        %v1030 = vmul.f32 %v978, %v1010
        %v1031 = vmul.f32 %v978, %v1014
        %v1032 = vmul.f32 %v978, %v1018
        %v1033 = vmul.f32 %v978, %v1022
        %v1034 = vmul.f32 %v978, %v1026
        %v1035 = vmul.f32 %v983, %v998
        %v1036 = vmul.f32 %v983, %v1002
        %v1037 = vmul.f32 %v983, %v1006
        %v1038 = vmul.f32 %v983, %v1010
        %v1039 = vmul.f32 %v983, %v1014
        %v1040 = vmul.f32 %v983, %v1018
        %v1041 = vmul.f32 %v983, %v1022
        %v1042 = vmul.f32 %v983, %v1026
        %v1043 = vmul.f32 %v988, %v998
        %v1044 = vmul.f32 %v988, %v1002
        %v1045 = vmul.f32 %v988, %v1006
        %v1046 = vmul.f32 %v988, %v1010
        %v1047 = vmul.f32 %v988, %v1014
        %v1048 = vmul.f32 %v988, %v1018
        %v1049 = vmul.f32 %v988, %v1022
        %v1050 = vmul.f32 %v988, %v1026
        %v1051 = vmul.f32 %v993, %v998
        %v1052 = vmul.f32 %v993, %v1002
        %v1053 = vmul.f32 %v993, %v1006
        %v1054 = vmul.f32 %v993, %v1010
        %v1055 = vmul.f32 %v993, %v1014
        %v1056 = vmul.f32 %v993, %v1018
        %v1057 = vmul.f32 %v993, %v1022
        %v1058 = vmul.f32 %v993, %v1026
        %vm1059 = vcmask 195584
        %v1061 = vsel %vm1059, %v397, 0
        %v1064 = vsel %vm1059, %v398, 0
        %v1067 = vsel %vm1059, %v399, 0
        %v1070 = vsel %vm1059, %v400, 0
        %1072 = vmatprep.subr.mxu0 %v952
        %1073 = vmatpush1.msra.mxu0 %v951
        %1074 = vmatprep.subr.mxu0 %v960
        %1075 = vmatpush1.msra.mxu0 %v959
        %1076 = vmatprep.subr.mxu0 %v968
        %1077 = vmatpush1.msra.mxu0 %v967
        %1078 = vmatprep.subr.mxu0 0.0
        %1079 = vmatpush1.msra.mxu0 0.0
        %1080 = vmatprep.subr.mxu0 0.0
        %1081 = vmatpush1.msra.mxu0 0.0
        %1082 = vmatprep.subr.mxu0 0.0
        %1083 = vmatpush1.msra.mxu0 0.0
        %1084 = vmatprep.subr.mxu0 0.0
        %1085 = vmatpush1.msra.mxu0 0.0
        %1086 = vmatprep.subr.mxu0 0.0
        %1087 = vmatpush1.msra.mxu0 0.0
        %1088 = vmatprep.subr.mxu0 0.0
        %1089 = vmatpush1.msra.mxu0 0.0
        %1090 = vmatprep.subr.mxu0 0.0
        %1091 = vmatpush1.msra.mxu0 0.0
        %1092 = vmatprep.subr.mxu0 0.0
        %1093 = vmatpush1.msra.mxu0 0.0
        %1094 = vmatprep.subr.mxu0 0.0
        %1095 = vmatpush1.msra.mxu0 0.0
        %1096 = vmatprep.subr.mxu0 0.0
        %1097 = vmatpush1.msra.mxu0 0.0
        %1098 = vmatprep.subr.mxu0 0.0
        %1099 = vmatpush1.msra.mxu0 0.0
        %1100 = vmatprep.subr.mxu0 0.0
        %1101 = vmatpush1.msra.mxu0 0.0
        %1102 = vmatprep.subr.mxu0 0.0
        %1103 = vmatpush1.msra.mxu0 0.0
        %1104 = vmatprep.subr.mxu0 0.0
        %1105 = vmatpush1.msra.mxu0 0.0
        %1106 = vmatprep.subr.mxu0 0.0
        %1107 = vmatpush1.msra.mxu0 0.0
        %1108 = vmatprep.subr.mxu0 0.0
        %1109 = vmatpush1.msra.mxu0 0.0
        %1110 = vmatprep.subr.mxu0 0.0
        %1111 = vmatpush1.msra.mxu0 0.0
        %1112 = vmatprep.subr.mxu0 0.0
        %1113 = vmatpush1.msra.mxu0 0.0
        %1114 = vmatprep.subr.mxu0 0.0
        %1115 = vmatpush1.msra.mxu0 0.0
        %1116 = vmatprep.subr.mxu0 0.0
        %1117 = vmatpush1.msra.mxu0 0.0
        %1118 = vmatprep.subr.mxu0 0.0
        %1119 = vmatpush1.msra.mxu0 0.0
        %1120 = vmatprep.subr.mxu0 0.0
        %1121 = vmatpush1.msra.mxu0 0.0
        %1122 = vmatprep.subr.mxu0 0.0
        %1123 = vmatpush1.msra.mxu0 0.0
        %1124 = vmatprep.subr.mxu0 0.0
        %1125 = vmatpush1.msra.mxu0 0.0
        %1126 = vmatprep.subr.mxu0 0.0
        %1127 = vmatpush1.msra.mxu0 0.0
        %1128 = vmatprep.subr.mxu0 0.0
        %1129 = vmatpush1.msra.mxu0 0.0
        %1130 = vmatprep.subr.mxu0 0.0
        %1131 = vmatpush1.msra.mxu0 0.0
        %1132 = vmatprep.subr.mxu0 0.0
        %1133 = vmatpush1.msra.mxu0 0.0
        %1134 = vmatprep.subr.mxu0 0.0
        %1135 = vmatpush1.msra.mxu0 0.0
        %1136 = vmatprep.mubr.f32.mxu0 0.0
        %1137 = vmatmul.mubr.f32.gmra.mrb[0].mxu0 %v1061
        %v1138 = vpop.f32.mrb[0].mxu0
        %v1139 = vadd.f32 %v1027, %v1138
        %v1140 = vpop.f32.mrb[0].mxu0
        %v1141 = vadd.f32 %v1028, %v1140
        %1142 = vmatprep.mubr.f32.mxu0 0.0
        %1143 = vmatmul.mubr.f32.gmra.mrb[0].mxu0 %v1064
        %v1144 = vpop.f32.mrb[0].mxu0
        %v1145 = vadd.f32 %v1035, %v1144
        %v1146 = vpop.f32.mrb[0].mxu0
        %v1147 = vadd.f32 %v1036, %v1146
        %1148 = vmatprep.mubr.f32.mxu0 0.0
        %1149 = vmatmul.mubr.f32.gmra.mrb[0].mxu0 %v1067
        %v1150 = vpop.f32.mrb[0].mxu0
        %v1151 = vadd.f32 %v1043, %v1150
        %v1152 = vpop.f32.mrb[0].mxu0
        %v1153 = vadd.f32 %v1044, %v1152
        %1154 = vmatprep.mubr.f32.mxu0 0.0
        %1155 = vmatmul.mubr.f32.gmra.mrb[0].mxu0 %v1070
        %v1156 = vpop.f32.mrb[0].mxu0
        %v1157 = vadd.f32 %v1051, %v1156
        %v1158 = vpop.f32.mrb[0].mxu0
        %v1159 = vadd.f32 %v1052, %v1158
        %1160 = vdwg.mxu0
        %1161 = vmatprep.subr.mxu0 %v954
        %1162 = vmatpush1.msra.mxu0 %v953
        %1163 = vmatprep.subr.mxu0 %v962
        %1164 = vmatpush1.msra.mxu0 %v961
        %1165 = vmatprep.subr.mxu0 %v970
        %1166 = vmatpush1.msra.mxu0 %v969
        %1167 = vmatprep.subr.mxu0 0.0
        %1168 = vmatpush1.msra.mxu0 0.0
        %1169 = vmatprep.subr.mxu0 0.0
        %1170 = vmatpush1.msra.mxu0 0.0
        %1171 = vmatprep.subr.mxu0 0.0
        %1172 = vmatpush1.msra.mxu0 0.0
        %1173 = vmatprep.subr.mxu0 0.0
        %1174 = vmatpush1.msra.mxu0 0.0
        %1175 = vmatprep.subr.mxu0 0.0
        %1176 = vmatpush1.msra.mxu0 0.0
        %1177 = vmatprep.subr.mxu0 0.0
        %1178 = vmatpush1.msra.mxu0 0.0
        %1179 = vmatprep.subr.mxu0 0.0
        %1180 = vmatpush1.msra.mxu0 0.0
        %1181 = vmatprep.subr.mxu0 0.0
        %1182 = vmatpush1.msra.mxu0 0.0
        %1183 = vmatprep.subr.mxu0 0.0
        %1184 = vmatpush1.msra.mxu0 0.0
        %1185 = vmatprep.subr.mxu0 0.0
        %1186 = vmatpush1.msra.mxu0 0.0
        %1187 = vmatprep.subr.mxu0 0.0
        %1188 = vmatpush1.msra.mxu0 0.0
        %1189 = vmatprep.subr.mxu0 0.0
        %1190 = vmatpush1.msra.mxu0 0.0
        %1191 = vmatprep.subr.mxu0 0.0
        %1192 = vmatpush1.msra.mxu0 0.0
        %1193 = vmatprep.subr.mxu0 0.0
        %1194 = vmatpush1.msra.mxu0 0.0
        %1195 = vmatprep.subr.mxu0 0.0
        %1196 = vmatpush1.msra.mxu0 0.0
        %1197 = vmatprep.subr.mxu0 0.0
        %1198 = vmatpush1.msra.mxu0 0.0
        %1199 = vmatprep.subr.mxu0 0.0
        %1200 = vmatpush1.msra.mxu0 0.0
        %1201 = vmatprep.subr.mxu0 0.0
        %1202 = vmatpush1.msra.mxu0 0.0
        %1203 = vmatprep.subr.mxu0 0.0
        %1204 = vmatpush1.msra.mxu0 0.0
        %1205 = vmatprep.subr.mxu0 0.0
        %1206 = vmatpush1.msra.mxu0 0.0
        %1207 = vmatprep.subr.mxu0 0.0
        %1208 = vmatpush1.msra.mxu0 0.0
        %1209 = vmatprep.subr.mxu0 0.0
        %1210 = vmatpush1.msra.mxu0 0.0
        %1211 = vmatprep.subr.mxu0 0.0
        %1212 = vmatpush1.msra.mxu0 0.0
        %1213 = vmatprep.subr.mxu0 0.0
        %1214 = vmatpush1.msra.mxu0 0.0
        %1215 = vmatprep.subr.mxu0 0.0
        %1216 = vmatpush1.msra.mxu0 0.0
        %1217 = vmatprep.subr.mxu0 0.0
        %1218 = vmatpush1.msra.mxu0 0.0
        %1219 = vmatprep.subr.mxu0 0.0
        %1220 = vmatpush1.msra.mxu0 0.0
        %1221 = vmatprep.subr.mxu0 0.0
        %1222 = vmatpush1.msra.mxu0 0.0
        %1223 = vmatprep.subr.mxu0 0.0
        %1224 = vmatpush1.msra.mxu0 0.0
        %1225 = vmatprep.mubr.f32.mxu0 0.0
        %1226 = vmatmul.mubr.f32.gmra.mrb[0].mxu0 %v1061
        %v1227 = vpop.f32.mrb[0].mxu0
        %v1228 = vadd.f32 %v1029, %v1227
        %v1229 = vpop.f32.mrb[0].mxu0
        %v1230 = vadd.f32 %v1030, %v1229
        %1231 = vmatprep.mubr.f32.mxu0 0.0
        %1232 = vmatmul.mubr.f32.gmra.mrb[0].mxu0 %v1064
        %v1233 = vpop.f32.mrb[0].mxu0
        %v1234 = vadd.f32 %v1037, %v1233
        %v1235 = vpop.f32.mrb[0].mxu0
        %v1236 = vadd.f32 %v1038, %v1235
        %1237 = vmatprep.mubr.f32.mxu0 0.0
        %1238 = vmatmul.mubr.f32.gmra.mrb[0].mxu0 %v1067
        %v1239 = vpop.f32.mrb[0].mxu0
        %v1240 = vadd.f32 %v1045, %v1239
        %v1241 = vpop.f32.mrb[0].mxu0
        %v1242 = vadd.f32 %v1046, %v1241
        %1243 = vmatprep.mubr.f32.mxu0 0.0
        %1244 = vmatmul.mubr.f32.gmra.mrb[0].mxu0 %v1070
        %v1245 = vpop.f32.mrb[0].mxu0
        %v1246 = vadd.f32 %v1053, %v1245
        %v1247 = vpop.f32.mrb[0].mxu0
        %v1248 = vadd.f32 %v1054, %v1247
        %1249 = vdwg.mxu0
        %1250 = vmatprep.subr.mxu0 %v956
        %1251 = vmatpush1.msra.mxu0 %v955
        %1252 = vmatprep.subr.mxu0 %v964
        %1253 = vmatpush1.msra.mxu0 %v963
        %1254 = vmatprep.subr.mxu0 %v972
        %1255 = vmatpush1.msra.mxu0 %v971
        %1256 = vmatprep.subr.mxu0 0.0
        %1257 = vmatpush1.msra.mxu0 0.0
        %1258 = vmatprep.subr.mxu0 0.0
        %1259 = vmatpush1.msra.mxu0 0.0
        %1260 = vmatprep.subr.mxu0 0.0
        %1261 = vmatpush1.msra.mxu0 0.0
        %1262 = vmatprep.subr.mxu0 0.0
        %1263 = vmatpush1.msra.mxu0 0.0
        %1264 = vmatprep.subr.mxu0 0.0
        %1265 = vmatpush1.msra.mxu0 0.0
        %1266 = vmatprep.subr.mxu0 0.0
        %1267 = vmatpush1.msra.mxu0 0.0
        %1268 = vmatprep.subr.mxu0 0.0
        %1269 = vmatpush1.msra.mxu0 0.0
        %1270 = vmatprep.subr.mxu0 0.0
        %1271 = vmatpush1.msra.mxu0 0.0
        %1272 = vmatprep.subr.mxu0 0.0
        %1273 = vmatpush1.msra.mxu0 0.0
        %1274 = vmatprep.subr.mxu0 0.0
        %1275 = vmatpush1.msra.mxu0 0.0
        %1276 = vmatprep.subr.mxu0 0.0
        %1277 = vmatpush1.msra.mxu0 0.0
        %1278 = vmatprep.subr.mxu0 0.0
        %1279 = vmatpush1.msra.mxu0 0.0
        %1280 = vmatprep.subr.mxu0 0.0
        %1281 = vmatpush1.msra.mxu0 0.0
        %1282 = vmatprep.subr.mxu0 0.0
        %1283 = vmatpush1.msra.mxu0 0.0
        %1284 = vmatprep.subr.mxu0 0.0
        %1285 = vmatpush1.msra.mxu0 0.0
        %1286 = vmatprep.subr.mxu0 0.0
        %1287 = vmatpush1.msra.mxu0 0.0
        %1288 = vmatprep.subr.mxu0 0.0
        %1289 = vmatpush1.msra.mxu0 0.0
        %1290 = vmatprep.subr.mxu0 0.0
        %1291 = vmatpush1.msra.mxu0 0.0
        %1292 = vmatprep.subr.mxu0 0.0
        %1293 = vmatpush1.msra.mxu0 0.0
        %1294 = vmatprep.subr.mxu0 0.0
        %1295 = vmatpush1.msra.mxu0 0.0
        %1296 = vmatprep.subr.mxu0 0.0
        %1297 = vmatpush1.msra.mxu0 0.0
        %1298 = vmatprep.subr.mxu0 0.0
        %1299 = vmatpush1.msra.mxu0 0.0
        %1300 = vmatprep.subr.mxu0 0.0
        %1301 = vmatpush1.msra.mxu0 0.0
        %1302 = vmatprep.subr.mxu0 0.0
        %1303 = vmatpush1.msra.mxu0 0.0
        %1304 = vmatprep.subr.mxu0 0.0
        %1305 = vmatpush1.msra.mxu0 0.0
        %1306 = vmatprep.subr.mxu0 0.0
        %1307 = vmatpush1.msra.mxu0 0.0
        %1308 = vmatprep.subr.mxu0 0.0
        %1309 = vmatpush1.msra.mxu0 0.0
        %1310 = vmatprep.subr.mxu0 0.0
        %1311 = vmatpush1.msra.mxu0 0.0
        %1312 = vmatprep.subr.mxu0 0.0
        %1313 = vmatpush1.msra.mxu0 0.0
        %1314 = vmatprep.mubr.f32.mxu0 0.0
        %1315 = vmatmul.mubr.f32.gmra.mrb[0].mxu0 %v1061
        %v1316 = vpop.f32.mrb[0].mxu0
        %v1317 = vadd.f32 %v1031, %v1316
        %v1318 = vpop.f32.mrb[0].mxu0
        %v1319 = vadd.f32 %v1032, %v1318
        %1320 = vmatprep.mubr.f32.mxu0 0.0
        %1321 = vmatmul.mubr.f32.gmra.mrb[0].mxu0 %v1064
        %v1322 = vpop.f32.mrb[0].mxu0
        %v1323 = vadd.f32 %v1039, %v1322
        %v1324 = vpop.f32.mrb[0].mxu0
        %v1325 = vadd.f32 %v1040, %v1324
        %1326 = vmatprep.mubr.f32.mxu0 0.0
        %1327 = vmatmul.mubr.f32.gmra.mrb[0].mxu0 %v1067
        %v1328 = vpop.f32.mrb[0].mxu0
        %v1329 = vadd.f32 %v1047, %v1328
        %v1330 = vpop.f32.mrb[0].mxu0
        %v1331 = vadd.f32 %v1048, %v1330
        %1332 = vmatprep.mubr.f32.mxu0 0.0
        %1333 = vmatmul.mubr.f32.gmra.mrb[0].mxu0 %v1070
        %v1334 = vpop.f32.mrb[0].mxu0
        %v1335 = vadd.f32 %v1055, %v1334
        %v1336 = vpop.f32.mrb[0].mxu0
        %v1337 = vadd.f32 %v1056, %v1336
        %1338 = vdwg.mxu0
        %1339 = vmatprep.subr.mxu0 %v958
        %1340 = vmatpush1.msra.mxu0 %v957
        %1341 = vmatprep.subr.mxu0 %v966
        %1342 = vmatpush1.msra.mxu0 %v965
        %1343 = vmatprep.subr.mxu0 %v974
        %1344 = vmatpush1.msra.mxu0 %v973
        %1345 = vmatprep.subr.mxu0 0.0
        %1346 = vmatpush1.msra.mxu0 0.0
        %1347 = vmatprep.subr.mxu0 0.0
        %1348 = vmatpush1.msra.mxu0 0.0
        %1349 = vmatprep.subr.mxu0 0.0
        %1350 = vmatpush1.msra.mxu0 0.0
        %1351 = vmatprep.subr.mxu0 0.0
        %1352 = vmatpush1.msra.mxu0 0.0
        %1353 = vmatprep.subr.mxu0 0.0
        %1354 = vmatpush1.msra.mxu0 0.0
        %1355 = vmatprep.subr.mxu0 0.0
        %1356 = vmatpush1.msra.mxu0 0.0
        %1357 = vmatprep.subr.mxu0 0.0
        %1358 = vmatpush1.msra.mxu0 0.0
        %1359 = vmatprep.subr.mxu0 0.0
        %1360 = vmatpush1.msra.mxu0 0.0
        %1361 = vmatprep.subr.mxu0 0.0
        %1362 = vmatpush1.msra.mxu0 0.0
        %1363 = vmatprep.subr.mxu0 0.0
        %1364 = vmatpush1.msra.mxu0 0.0
        %1365 = vmatprep.subr.mxu0 0.0
        %1366 = vmatpush1.msra.mxu0 0.0
        %1367 = vmatprep.subr.mxu0 0.0
        %1368 = vmatpush1.msra.mxu0 0.0
        %1369 = vmatprep.subr.mxu0 0.0
        %1370 = vmatpush1.msra.mxu0 0.0
        %1371 = vmatprep.subr.mxu0 0.0
        %1372 = vmatpush1.msra.mxu0 0.0
        %1373 = vmatprep.subr.mxu0 0.0
        %1374 = vmatpush1.msra.mxu0 0.0
        %1375 = vmatprep.subr.mxu0 0.0
        %1376 = vmatpush1.msra.mxu0 0.0
        %1377 = vmatprep.subr.mxu0 0.0
        %1378 = vmatpush1.msra.mxu0 0.0
        %1379 = vmatprep.subr.mxu0 0.0
        %1380 = vmatpush1.msra.mxu0 0.0
        %1381 = vmatprep.subr.mxu0 0.0
        %1382 = vmatpush1.msra.mxu0 0.0
        %1383 = vmatprep.subr.mxu0 0.0
        %1384 = vmatpush1.msra.mxu0 0.0
        %1385 = vmatprep.subr.mxu0 0.0
        %1386 = vmatpush1.msra.mxu0 0.0
        %1387 = vmatprep.subr.mxu0 0.0
        %1388 = vmatpush1.msra.mxu0 0.0
        %1389 = vmatprep.subr.mxu0 0.0
        %1390 = vmatpush1.msra.mxu0 0.0
        %1391 = vmatprep.subr.mxu0 0.0
        %1392 = vmatpush1.msra.mxu0 0.0
        %1393 = vmatprep.subr.mxu0 0.0
        %1394 = vmatpush1.msra.mxu0 0.0
        %1395 = vmatprep.subr.mxu0 0.0
        %1396 = vmatpush1.msra.mxu0 0.0
        %1397 = vmatprep.subr.mxu0 0.0
        %1398 = vmatpush1.msra.mxu0 0.0
        %1399 = vmatprep.subr.mxu0 0.0
        %1400 = vmatpush1.msra.mxu0 0.0
        %1401 = vmatprep.subr.mxu0 0.0
        %1402 = vmatpush1.msra.mxu0 0.0
        %1403 = vmatprep.mubr.f32.mxu0 0.0
        %1404 = vmatmul.mubr.f32.gmra.mrb[0].mxu0 %v1061
        %v1405 = vpop.f32.mrb[0].mxu0
        %v1406 = vadd.f32 %v1033, %v1405
        %v1407 = vpop.f32.mrb[0].mxu0
        %v1408 = vadd.f32 %v1034, %v1407
        %1409 = vmatprep.mubr.f32.mxu0 0.0
        %1410 = vmatmul.mubr.f32.gmra.mrb[0].mxu0 %v1064
        %v1411 = vpop.f32.mrb[0].mxu0
        %v1412 = vadd.f32 %v1041, %v1411
        %v1413 = vpop.f32.mrb[0].mxu0
        %v1414 = vadd.f32 %v1042, %v1413
        %1415 = vmatprep.mubr.f32.mxu0 0.0
        %1416 = vmatmul.mubr.f32.gmra.mrb[0].mxu0 %v1067
        %v1417 = vpop.f32.mrb[0].mxu0
        %v1418 = vadd.f32 %v1049, %v1417
        %v1419 = vpop.f32.mrb[0].mxu0
        %v1420 = vadd.f32 %v1050, %v1419
        %1421 = vmatprep.mubr.f32.mxu0 0.0
        %1422 = vmatmul.mubr.f32.gmra.mrb[0].mxu0 %v1070
        %v1423 = vpop.f32.mrb[0].mxu0
        %v1424 = vadd.f32 %v1057, %v1423
        %v1425 = vpop.f32.mrb[0].mxu0
        %v1426 = vadd.f32 %v1058, %v1425
        %1427 = vdwg.mxu0
        %1429 = vset.pattern.permute.xlu0 0
        %1430 = vperm.xlu0 %1429, %v405
        %v1431 = vpop.permute.xlu0 %1430
        %1434 = vset.pattern.permute.xlu0 0
        %1435 = vperm.xlu0 %1434, %v406
        %v1436 = vpop.permute.xlu0 %1435
        %1439 = vset.pattern.permute.xlu0 0
        %1440 = vperm.xlu0 %1439, %v407
        %v1441 = vpop.permute.xlu0 %1440
        %1444 = vset.pattern.permute.xlu0 0
        %1445 = vperm.xlu0 %1444, %v408
        %v1446 = vpop.permute.xlu0 %1445
        %v1448 = vadd.f32 %v1139, %v1431
        %v1449 = vadd.f32 %v1141, %v1431
        %v1450 = vadd.f32 %v1228, %v1431
        %v1451 = vadd.f32 %v1230, %v1431
        %v1452 = vadd.f32 %v1317, %v1431
        %v1453 = vadd.f32 %v1319, %v1431
        %v1454 = vadd.f32 %v1406, %v1431
        %v1455 = vadd.f32 %v1408, %v1431
        %v1456 = vadd.f32 %v1145, %v1436
        %v1457 = vadd.f32 %v1147, %v1436
        %v1458 = vadd.f32 %v1234, %v1436
        %v1459 = vadd.f32 %v1236, %v1436
        %v1460 = vadd.f32 %v1323, %v1436
        %v1461 = vadd.f32 %v1325, %v1436
        %v1462 = vadd.f32 %v1412, %v1436
        %v1463 = vadd.f32 %v1414, %v1436
        %v1464 = vadd.f32 %v1151, %v1441
        %v1465 = vadd.f32 %v1153, %v1441
        %v1466 = vadd.f32 %v1240, %v1441
        %v1467 = vadd.f32 %v1242, %v1441
        %v1468 = vadd.f32 %v1329, %v1441
        %v1469 = vadd.f32 %v1331, %v1441
        %v1470 = vadd.f32 %v1418, %v1441
        %v1471 = vadd.f32 %v1420, %v1441
        %v1472 = vadd.f32 %v1157, %v1446
        %v1473 = vadd.f32 %v1159, %v1446
        %v1474 = vadd.f32 %v1246, %v1446
        %v1475 = vadd.f32 %v1248, %v1446
        %v1476 = vadd.f32 %v1335, %v1446
        %v1477 = vadd.f32 %v1337, %v1446
        %v1478 = vadd.f32 %v1424, %v1446
        %v1479 = vadd.f32 %v1426, %v1446
        %vm1480 = vcmp.gt.f32.partialorder %v1448, 0.0
        %vm1481 = vcmp.gt.f32.partialorder %v1449, 0.0
        %vm1482 = vcmp.gt.f32.partialorder %v1450, 0.0
        %vm1483 = vcmp.gt.f32.partialorder %v1451, 0.0
        %vm1484 = vcmp.gt.f32.partialorder %v1452, 0.0
        %vm1485 = vcmp.gt.f32.partialorder %v1453, 0.0
        %vm1486 = vcmp.gt.f32.partialorder %v1454, 0.0
        %vm1487 = vcmp.gt.f32.partialorder %v1455, 0.0
        %vm1488 = vcmp.gt.f32.partialorder %v1456, 0.0
        %vm1489 = vcmp.gt.f32.partialorder %v1457, 0.0
        %vm1490 = vcmp.gt.f32.partialorder %v1458, 0.0
        %vm1491 = vcmp.gt.f32.partialorder %v1459, 0.0
        %vm1492 = vcmp.gt.f32.partialorder %v1460, 0.0
        %vm1493 = vcmp.gt.f32.partialorder %v1461, 0.0
        %vm1494 = vcmp.gt.f32.partialorder %v1462, 0.0
        %vm1495 = vcmp.gt.f32.partialorder %v1463, 0.0
        %vm1496 = vcmp.gt.f32.partialorder %v1464, 0.0
        %vm1497 = vcmp.gt.f32.partialorder %v1465, 0.0
        %vm1498 = vcmp.gt.f32.partialorder %v1466, 0.0
        %vm1499 = vcmp.gt.f32.partialorder %v1467, 0.0
        %vm1500 = vcmp.gt.f32.partialorder %v1468, 0.0
        %vm1501 = vcmp.gt.f32.partialorder %v1469, 0.0
        %vm1502 = vcmp.gt.f32.partialorder %v1470, 0.0
        %vm1503 = vcmp.gt.f32.partialorder %v1471, 0.0
        %vm1504 = vcmp.gt.f32.partialorder %v1472, 0.0
        %vm1505 = vcmp.gt.f32.partialorder %v1473, 0.0
        %vm1506 = vcmp.gt.f32.partialorder %v1474, 0.0
        %vm1507 = vcmp.gt.f32.partialorder %v1475, 0.0
        %vm1508 = vcmp.gt.f32.partialorder %v1476, 0.0
        %vm1509 = vcmp.gt.f32.partialorder %v1477, 0.0
        %vm1510 = vcmp.gt.f32.partialorder %v1478, 0.0
        %vm1511 = vcmp.gt.f32.partialorder %v1479, 0.0
        %v1512 = vmul.f32 %v1448, 0.2
        %v1513 = vmul.f32 %v1449, 0.2
        %v1514 = vmul.f32 %v1450, 0.2
        %v1515 = vmul.f32 %v1451, 0.2
        %v1516 = vmul.f32 %v1452, 0.2
        %v1517 = vmul.f32 %v1453, 0.2
        %v1518 = vmul.f32 %v1454, 0.2
        %v1519 = vmul.f32 %v1455, 0.2
        %v1520 = vmul.f32 %v1456, 0.2
        %v1521 = vmul.f32 %v1457, 0.2
        %v1522 = vmul.f32 %v1458, 0.2
        %v1523 = vmul.f32 %v1459, 0.2
        %v1524 = vmul.f32 %v1460, 0.2
        %v1525 = vmul.f32 %v1461, 0.2
        %v1526 = vmul.f32 %v1462, 0.2
        %v1527 = vmul.f32 %v1463, 0.2
        %v1528 = vmul.f32 %v1464, 0.2
        %v1529 = vmul.f32 %v1465, 0.2
        %v1530 = vmul.f32 %v1466, 0.2
        %v1531 = vmul.f32 %v1467, 0.2
        %v1532 = vmul.f32 %v1468, 0.2
        %v1533 = vmul.f32 %v1469, 0.2
        %v1534 = vmul.f32 %v1470, 0.2
        %v1535 = vmul.f32 %v1471, 0.2
        %v1536 = vmul.f32 %v1472, 0.2
        %v1537 = vmul.f32 %v1473, 0.2
        %v1538 = vmul.f32 %v1474, 0.2
        %v1539 = vmul.f32 %v1475, 0.2
        %v1540 = vmul.f32 %v1476, 0.2
        %v1541 = vmul.f32 %v1477, 0.2
        %v1542 = vmul.f32 %v1478, 0.2
        %v1543 = vmul.f32 %v1479, 0.2
        %v1544 = vsel %vm1480, %v1448, %v1512
        %v1545 = vsel %vm1481, %v1449, %v1513
        %v1546 = vsel %vm1482, %v1450, %v1514
        %v1547 = vsel %vm1483, %v1451, %v1515
        %v1548 = vsel %vm1484, %v1452, %v1516
        %v1549 = vsel %vm1485, %v1453, %v1517
        %v1550 = vsel %vm1486, %v1454, %v1518
        %v1551 = vsel %vm1487, %v1455, %v1519
        %v1552 = vsel %vm1488, %v1456, %v1520
        %v1553 = vsel %vm1489, %v1457, %v1521
        %v1554 = vsel %vm1490, %v1458, %v1522
        %v1555 = vsel %vm1491, %v1459, %v1523
        %v1556 = vsel %vm1492, %v1460, %v1524
        %v1557 = vsel %vm1493, %v1461, %v1525
        %v1558 = vsel %vm1494, %v1462, %v1526
        %v1559 = vsel %vm1495, %v1463, %v1527
        %v1560 = vsel %vm1496, %v1464, %v1528
        %v1561 = vsel %vm1497, %v1465, %v1529
        %v1562 = vsel %vm1498, %v1466, %v1530
        %v1563 = vsel %vm1499, %v1467, %v1531
        %v1564 = vsel %vm1500, %v1468, %v1532
        %v1565 = vsel %vm1501, %v1469, %v1533
        %v1566 = vsel %vm1502, %v1470, %v1534
        %v1567 = vsel %vm1503, %v1471, %v1535
        %v1568 = vsel %vm1504, %v1472, %v1536
        %v1569 = vsel %vm1505, %v1473, %v1537
        %v1570 = vsel %vm1506, %v1474, %v1538
        %v1571 = vsel %vm1507, %v1475, %v1539
        %v1572 = vsel %vm1508, %v1476, %v1540
        %v1573 = vsel %vm1509, %v1477, %v1541
        %v1574 = vsel %vm1510, %v1478, %v1542
        %v1575 = vsel %vm1511, %v1479, %v1543
        %v1576 = vld [vmem:[%s5] sm:$0xff]
        %v1577 = vld [vmem:[%s5 + $0x8] sm:$0xff]
        %v1578 = vld [vmem:[%s5 + $0x10] sm:$0xff]
        %v1579 = vld [vmem:[%s5 + $0x18] sm:$0xff]
        %v1580 = vld [vmem:[%s6] sm:$0xff]
        %v1581 = vld [vmem:[%s6 + $0x8] sm:$0xff]
        %v1582 = vld [vmem:[%s6 + $0x10] sm:$0xff]
        %v1583 = vld [vmem:[%s6 + $0x18] sm:$0xff]
        %1585 = vset.pattern.permute.xlu0 0
        %1586 = vperm.xlu0 %1585, %v1580
        %v1587 = vpop.permute.xlu0 %1586
        %1590 = vset.pattern.permute.xlu0 0
        %1591 = vperm.xlu0 %1590, %v1581
        %v1592 = vpop.permute.xlu0 %1591
        %1595 = vset.pattern.permute.xlu0 0
        %1596 = vperm.xlu0 %1595, %v1582
        %v1597 = vpop.permute.xlu0 %1596
        %1600 = vset.pattern.permute.xlu0 0
        %1601 = vperm.xlu0 %1600, %v1583
        %v1602 = vpop.permute.xlu0 %1601
        %vm1604 = vcmask 261120
        %v1606 = vsel %vm1604, %v1576, 0
        %v1609 = vsel %vm1604, %v1577, 0
        %v1612 = vsel %vm1604, %v1578, 0
        %v1615 = vsel %vm1604, %v1579, 0
        %1617 = vmatprep.subr.mxu0 %v1545
        %1618 = vmatpush1.msra.mxu0 %v1544
        %1619 = vmatprep.subr.mxu0 %v1553
        %1620 = vmatpush1.msra.mxu0 %v1552
        %1621 = vmatprep.subr.mxu0 %v1561
        %1622 = vmatpush1.msra.mxu0 %v1560
        %1623 = vmatprep.subr.mxu0 %v1569
        %1624 = vmatpush1.msra.mxu0 %v1568
        %1625 = vmatprep.subr.mxu0 0.0
        %1626 = vmatpush1.msra.mxu0 0.0
        %1627 = vmatprep.subr.mxu0 0.0
        %1628 = vmatpush1.msra.mxu0 0.0
        %1629 = vmatprep.subr.mxu0 0.0
        %1630 = vmatpush1.msra.mxu0 0.0
        %1631 = vmatprep.subr.mxu0 0.0
        %1632 = vmatpush1.msra.mxu0 0.0
        %1633 = vmatprep.subr.mxu0 0.0
        %1634 = vmatpush1.msra.mxu0 0.0
        %1635 = vmatprep.subr.mxu0 0.0
        %1636 = vmatpush1.msra.mxu0 0.0
        %1637 = vmatprep.subr.mxu0 0.0
        %1638 = vmatpush1.msra.mxu0 0.0
        %1639 = vmatprep.subr.mxu0 0.0
        %1640 = vmatpush1.msra.mxu0 0.0
        %1641 = vmatprep.subr.mxu0 0.0
        %1642 = vmatpush1.msra.mxu0 0.0
        %1643 = vmatprep.subr.mxu0 0.0
        %1644 = vmatpush1.msra.mxu0 0.0
        %1645 = vmatprep.subr.mxu0 0.0
        %1646 = vmatpush1.msra.mxu0 0.0
        %1647 = vmatprep.subr.mxu0 0.0
        %1648 = vmatpush1.msra.mxu0 0.0
        %1649 = vmatprep.subr.mxu0 0.0
        %1650 = vmatpush1.msra.mxu0 0.0
        %1651 = vmatprep.subr.mxu0 0.0
        %1652 = vmatpush1.msra.mxu0 0.0
        %1653 = vmatprep.subr.mxu0 0.0
        %1654 = vmatpush1.msra.mxu0 0.0
        %1655 = vmatprep.subr.mxu0 0.0
        %1656 = vmatpush1.msra.mxu0 0.0
        %1657 = vmatprep.subr.mxu0 0.0
        %1658 = vmatpush1.msra.mxu0 0.0
        %1659 = vmatprep.subr.mxu0 0.0
        %1660 = vmatpush1.msra.mxu0 0.0
        %1661 = vmatprep.subr.mxu0 0.0
        %1662 = vmatpush1.msra.mxu0 0.0
        %1663 = vmatprep.subr.mxu0 0.0
        %1664 = vmatpush1.msra.mxu0 0.0
        %1665 = vmatprep.subr.mxu0 0.0
        %1666 = vmatpush1.msra.mxu0 0.0
        %1667 = vmatprep.subr.mxu0 0.0
        %1668 = vmatpush1.msra.mxu0 0.0
        %1669 = vmatprep.subr.mxu0 0.0
        %1670 = vmatpush1.msra.mxu0 0.0
        %1671 = vmatprep.subr.mxu0 0.0
        %1672 = vmatpush1.msra.mxu0 0.0
        %1673 = vmatprep.subr.mxu0 0.0
        %1674 = vmatpush1.msra.mxu0 0.0
        %1675 = vmatprep.subr.mxu0 0.0
        %1676 = vmatpush1.msra.mxu0 0.0
        %1677 = vmatprep.subr.mxu0 0.0
        %1678 = vmatpush1.msra.mxu0 0.0
        %1679 = vmatprep.subr.mxu0 0.0
        %1680 = vmatpush1.msra.mxu0 0.0
        %1681 = vmatprep.mubr.f32.mxu0 0.0
        %1682 = vmatmul.mubr.f32.gmra.mrb[0].mxu0 %v1606
        %v1683 = vpop.f32.mrb[0].mxu0
        %v1684 = vadd.f32 %v1587, %v1683
        %v1685 = vpop.f32.mrb[0].mxu0
        %v1686 = vadd.f32 %v1587, %v1685
        %1687 = vmatprep.mubr.f32.mxu0 0.0
        %1688 = vmatmul.mubr.f32.gmra.mrb[0].mxu0 %v1609
        %v1689 = vpop.f32.mrb[0].mxu0
        %v1690 = vadd.f32 %v1592, %v1689
        %v1691 = vpop.f32.mrb[0].mxu0
        %v1692 = vadd.f32 %v1592, %v1691
        %1693 = vmatprep.mubr.f32.mxu0 0.0
        %1694 = vmatmul.mubr.f32.gmra.mrb[0].mxu0 %v1612
        %v1695 = vpop.f32.mrb[0].mxu0
        %v1696 = vadd.f32 %v1597, %v1695
        %v1697 = vpop.f32.mrb[0].mxu0
        %v1698 = vadd.f32 %v1597, %v1697
        %1699 = vmatprep.mubr.f32.mxu0 0.0
        %1700 = vmatmul.mubr.f32.gmra.mrb[0].mxu0 %v1615
        %v1701 = vpop.f32.mrb[0].mxu0
        %v1702 = vadd.f32 %v1602, %v1701
        %v1703 = vpop.f32.mrb[0].mxu0
        %v1704 = vadd.f32 %v1602, %v1703
        %1705 = vdwg.mxu0
        %1706 = vmatprep.subr.mxu0 %v1547
        %1707 = vmatpush1.msra.mxu0 %v1546
        %1708 = vmatprep.subr.mxu0 %v1555
        %1709 = vmatpush1.msra.mxu0 %v1554
        %1710 = vmatprep.subr.mxu0 %v1563
        %1711 = vmatpush1.msra.mxu0 %v1562
        %1712 = vmatprep.subr.mxu0 %v1571
        %1713 = vmatpush1.msra.mxu0 %v1570
        %1714 = vmatprep.subr.mxu0 0.0
        %1715 = vmatpush1.msra.mxu0 0.0
        %1716 = vmatprep.subr.mxu0 0.0
        %1717 = vmatpush1.msra.mxu0 0.0
        %1718 = vmatprep.subr.mxu0 0.0
        %1719 = vmatpush1.msra.mxu0 0.0
        %1720 = vmatprep.subr.mxu0 0.0
        %1721 = vmatpush1.msra.mxu0 0.0
        %1722 = vmatprep.subr.mxu0 0.0
        %1723 = vmatpush1.msra.mxu0 0.0
        %1724 = vmatprep.subr.mxu0 0.0
        %1725 = vmatpush1.msra.mxu0 0.0
        %1726 = vmatprep.subr.mxu0 0.0
        %1727 = vmatpush1.msra.mxu0 0.0
        %1728 = vmatprep.subr.mxu0 0.0
        %1729 = vmatpush1.msra.mxu0 0.0
        %1730 = vmatprep.subr.mxu0 0.0
        %1731 = vmatpush1.msra.mxu0 0.0
        %1732 = vmatprep.subr.mxu0 0.0
        %1733 = vmatpush1.msra.mxu0 0.0
        %1734 = vmatprep.subr.mxu0 0.0
        %1735 = vmatpush1.msra.mxu0 0.0
        %1736 = vmatprep.subr.mxu0 0.0
        %1737 = vmatpush1.msra.mxu0 0.0
        %1738 = vmatprep.subr.mxu0 0.0
        %1739 = vmatpush1.msra.mxu0 0.0
        %1740 = vmatprep.subr.mxu0 0.0
        %1741 = vmatpush1.msra.mxu0 0.0
        %1742 = vmatprep.subr.mxu0 0.0
        %1743 = vmatpush1.msra.mxu0 0.0
        %1744 = vmatprep.subr.mxu0 0.0
        %1745 = vmatpush1.msra.mxu0 0.0
        %1746 = vmatprep.subr.mxu0 0.0
        %1747 = vmatpush1.msra.mxu0 0.0
        %1748 = vmatprep.subr.mxu0 0.0
        %1749 = vmatpush1.msra.mxu0 0.0
        %1750 = vmatprep.subr.mxu0 0.0
        %1751 = vmatpush1.msra.mxu0 0.0
        %1752 = vmatprep.subr.mxu0 0.0
        %1753 = vmatpush1.msra.mxu0 0.0
        %1754 = vmatprep.subr.mxu0 0.0
        %1755 = vmatpush1.msra.mxu0 0.0
        %1756 = vmatprep.subr.mxu0 0.0
        %1757 = vmatpush1.msra.mxu0 0.0
        %1758 = vmatprep.subr.mxu0 0.0
        %1759 = vmatpush1.msra.mxu0 0.0
        %1760 = vmatprep.subr.mxu0 0.0
        %1761 = vmatpush1.msra.mxu0 0.0
        %1762 = vmatprep.subr.mxu0 0.0
        %1763 = vmatpush1.msra.mxu0 0.0
        %1764 = vmatprep.subr.mxu0 0.0
        %1765 = vmatpush1.msra.mxu0 0.0
        %1766 = vmatprep.subr.mxu0 0.0
        %1767 = vmatpush1.msra.mxu0 0.0
        %1768 = vmatprep.subr.mxu0 0.0
        %1769 = vmatpush1.msra.mxu0 0.0
        %1770 = vmatprep.mubr.f32.mxu0 0.0
        %1771 = vmatmul.mubr.f32.gmra.mrb[0].mxu0 %v1606
        %v1772 = vpop.f32.mrb[0].mxu0
        %v1773 = vadd.f32 %v1587, %v1772
        %v1774 = vpop.f32.mrb[0].mxu0
        %v1775 = vadd.f32 %v1587, %v1774
        %1776 = vmatprep.mubr.f32.mxu0 0.0
        %1777 = vmatmul.mubr.f32.gmra.mrb[0].mxu0 %v1609
        %v1778 = vpop.f32.mrb[0].mxu0
        %v1779 = vadd.f32 %v1592, %v1778
        %v1780 = vpop.f32.mrb[0].mxu0
        %v1781 = vadd.f32 %v1592, %v1780
        %1782 = vmatprep.mubr.f32.mxu0 0.0
        %1783 = vmatmul.mubr.f32.gmra.mrb[0].mxu0 %v1612
        %v1784 = vpop.f32.mrb[0].mxu0
        %v1785 = vadd.f32 %v1597, %v1784
        %v1786 = vpop.f32.mrb[0].mxu0
        %v1787 = vadd.f32 %v1597, %v1786
        %1788 = vmatprep.mubr.f32.mxu0 0.0
        %1789 = vmatmul.mubr.f32.gmra.mrb[0].mxu0 %v1615
        %v1790 = vpop.f32.mrb[0].mxu0
        %v1791 = vadd.f32 %v1602, %v1790
        %v1792 = vpop.f32.mrb[0].mxu0
        %v1793 = vadd.f32 %v1602, %v1792
        %1794 = vdwg.mxu0
        %1795 = vmatprep.subr.mxu0 %v1549
        %1796 = vmatpush1.msra.mxu0 %v1548
        %1797 = vmatprep.subr.mxu0 %v1557
        %1798 = vmatpush1.msra.mxu0 %v1556
        %1799 = vmatprep.subr.mxu0 %v1565
        %1800 = vmatpush1.msra.mxu0 %v1564
        %1801 = vmatprep.subr.mxu0 %v1573
        %1802 = vmatpush1.msra.mxu0 %v1572
        %1803 = vmatprep.subr.mxu0 0.0
        %1804 = vmatpush1.msra.mxu0 0.0
        %1805 = vmatprep.subr.mxu0 0.0
        %1806 = vmatpush1.msra.mxu0 0.0
        %1807 = vmatprep.subr.mxu0 0.0
        %1808 = vmatpush1.msra.mxu0 0.0
        %1809 = vmatprep.subr.mxu0 0.0
        %1810 = vmatpush1.msra.mxu0 0.0
        %1811 = vmatprep.subr.mxu0 0.0
        %1812 = vmatpush1.msra.mxu0 0.0
        %1813 = vmatprep.subr.mxu0 0.0
        %1814 = vmatpush1.msra.mxu0 0.0
        %1815 = vmatprep.subr.mxu0 0.0
        %1816 = vmatpush1.msra.mxu0 0.0
        %1817 = vmatprep.subr.mxu0 0.0
        %1818 = vmatpush1.msra.mxu0 0.0
        %1819 = vmatprep.subr.mxu0 0.0
        %1820 = vmatpush1.msra.mxu0 0.0
        %1821 = vmatprep.subr.mxu0 0.0
        %1822 = vmatpush1.msra.mxu0 0.0
        %1823 = vmatprep.subr.mxu0 0.0
        %1824 = vmatpush1.msra.mxu0 0.0
        %1825 = vmatprep.subr.mxu0 0.0
        %1826 = vmatpush1.msra.mxu0 0.0
        %1827 = vmatprep.subr.mxu0 0.0
        %1828 = vmatpush1.msra.mxu0 0.0
        %1829 = vmatprep.subr.mxu0 0.0
        %1830 = vmatpush1.msra.mxu0 0.0
        %1831 = vmatprep.subr.mxu0 0.0
        %1832 = vmatpush1.msra.mxu0 0.0
        %1833 = vmatprep.subr.mxu0 0.0
        %1834 = vmatpush1.msra.mxu0 0.0
        %1835 = vmatprep.subr.mxu0 0.0
        %1836 = vmatpush1.msra.mxu0 0.0
        %1837 = vmatprep.subr.mxu0 0.0
        %1838 = vmatpush1.msra.mxu0 0.0
        %1839 = vmatprep.subr.mxu0 0.0
        %1840 = vmatpush1.msra.mxu0 0.0
        %1841 = vmatprep.subr.mxu0 0.0
        %1842 = vmatpush1.msra.mxu0 0.0
        %1843 = vmatprep.subr.mxu0 0.0
        %1844 = vmatpush1.msra.mxu0 0.0
        %1845 = vmatprep.subr.mxu0 0.0
        %1846 = vmatpush1.msra.mxu0 0.0
        %1847 = vmatprep.subr.mxu0 0.0
        %1848 = vmatpush1.msra.mxu0 0.0
        %1849 = vmatprep.subr.mxu0 0.0
        %1850 = vmatpush1.msra.mxu0 0.0
        %1851 = vmatprep.subr.mxu0 0.0
        %1852 = vmatpush1.msra.mxu0 0.0
        %1853 = vmatprep.subr.mxu0 0.0
        %1854 = vmatpush1.msra.mxu0 0.0
        %1855 = vmatprep.subr.mxu0 0.0
        %1856 = vmatpush1.msra.mxu0 0.0
        %1857 = vmatprep.subr.mxu0 0.0
        %1858 = vmatpush1.msra.mxu0 0.0
        %1859 = vmatprep.mubr.f32.mxu0 0.0
        %1860 = vmatmul.mubr.f32.gmra.mrb[0].mxu0 %v1606
        %v1861 = vpop.f32.mrb[0].mxu0
        %v1862 = vadd.f32 %v1587, %v1861
        %v1863 = vpop.f32.mrb[0].mxu0
        %v1864 = vadd.f32 %v1587, %v1863
        %1865 = vmatprep.mubr.f32.mxu0 0.0
        %1866 = vmatmul.mubr.f32.gmra.mrb[0].mxu0 %v1609
        %v1867 = vpop.f32.mrb[0].mxu0
        %v1868 = vadd.f32 %v1592, %v1867
        %v1869 = vpop.f32.mrb[0].mxu0
        %v1870 = vadd.f32 %v1592, %v1869
        %1871 = vmatprep.mubr.f32.mxu0 0.0
        %1872 = vmatmul.mubr.f32.gmra.mrb[0].mxu0 %v1612
        %v1873 = vpop.f32.mrb[0].mxu0
        %v1874 = vadd.f32 %v1597, %v1873
        %v1875 = vpop.f32.mrb[0].mxu0
        %v1876 = vadd.f32 %v1597, %v1875
        %1877 = vmatprep.mubr.f32.mxu0 0.0
        %1878 = vmatmul.mubr.f32.gmra.mrb[0].mxu0 %v1615
        %v1879 = vpop.f32.mrb[0].mxu0
        %v1880 = vadd.f32 %v1602, %v1879
        %v1881 = vpop.f32.mrb[0].mxu0
        %v1882 = vadd.f32 %v1602, %v1881
        %1883 = vdwg.mxu0
        %1884 = vmatprep.subr.mxu0 %v1551
        %1885 = vmatpush1.msra.mxu0 %v1550
        %1886 = vmatprep.subr.mxu0 %v1559
        %1887 = vmatpush1.msra.mxu0 %v1558
        %1888 = vmatprep.subr.mxu0 %v1567
        %1889 = vmatpush1.msra.mxu0 %v1566
        %1890 = vmatprep.subr.mxu0 %v1575
        %1891 = vmatpush1.msra.mxu0 %v1574
        %1892 = vmatprep.subr.mxu0 0.0
        %1893 = vmatpush1.msra.mxu0 0.0
        %1894 = vmatprep.subr.mxu0 0.0
        %1895 = vmatpush1.msra.mxu0 0.0
        %1896 = vmatprep.subr.mxu0 0.0
        %1897 = vmatpush1.msra.mxu0 0.0
        %1898 = vmatprep.subr.mxu0 0.0
        %1899 = vmatpush1.msra.mxu0 0.0
        %1900 = vmatprep.subr.mxu0 0.0
        %1901 = vmatpush1.msra.mxu0 0.0
        %1902 = vmatprep.subr.mxu0 0.0
        %1903 = vmatpush1.msra.mxu0 0.0
        %1904 = vmatprep.subr.mxu0 0.0
        %1905 = vmatpush1.msra.mxu0 0.0
        %1906 = vmatprep.subr.mxu0 0.0
        %1907 = vmatpush1.msra.mxu0 0.0
        %1908 = vmatprep.subr.mxu0 0.0
        %1909 = vmatpush1.msra.mxu0 0.0
        %1910 = vmatprep.subr.mxu0 0.0
        %1911 = vmatpush1.msra.mxu0 0.0
        %1912 = vmatprep.subr.mxu0 0.0
        %1913 = vmatpush1.msra.mxu0 0.0
        %1914 = vmatprep.subr.mxu0 0.0
        %1915 = vmatpush1.msra.mxu0 0.0
        %1916 = vmatprep.subr.mxu0 0.0
        %1917 = vmatpush1.msra.mxu0 0.0
        %1918 = vmatprep.subr.mxu0 0.0
        %1919 = vmatpush1.msra.mxu0 0.0
        %1920 = vmatprep.subr.mxu0 0.0
        %1921 = vmatpush1.msra.mxu0 0.0
        %1922 = vmatprep.subr.mxu0 0.0
        %1923 = vmatpush1.msra.mxu0 0.0
        %1924 = vmatprep.subr.mxu0 0.0
        %1925 = vmatpush1.msra.mxu0 0.0
        %1926 = vmatprep.subr.mxu0 0.0
        %1927 = vmatpush1.msra.mxu0 0.0
        %1928 = vmatprep.subr.mxu0 0.0
        %1929 = vmatpush1.msra.mxu0 0.0
        %1930 = vmatprep.subr.mxu0 0.0
        %1931 = vmatpush1.msra.mxu0 0.0
        %1932 = vmatprep.subr.mxu0 0.0
        %1933 = vmatpush1.msra.mxu0 0.0
        %1934 = vmatprep.subr.mxu0 0.0
        %1935 = vmatpush1.msra.mxu0 0.0
        %1936 = vmatprep.subr.mxu0 0.0
        %1937 = vmatpush1.msra.mxu0 0.0
        %1938 = vmatprep.subr.mxu0 0.0
        %1939 = vmatpush1.msra.mxu0 0.0
        %1940 = vmatprep.subr.mxu0 0.0
        %1941 = vmatpush1.msra.mxu0 0.0
        %1942 = vmatprep.subr.mxu0 0.0
        %1943 = vmatpush1.msra.mxu0 0.0
        %1944 = vmatprep.subr.mxu0 0.0
        %1945 = vmatpush1.msra.mxu0 0.0
        %1946 = vmatprep.subr.mxu0 0.0
        %1947 = vmatpush1.msra.mxu0 0.0
        %1948 = vmatprep.mubr.f32.mxu0 0.0
        %1949 = vmatmul.mubr.f32.gmra.mrb[0].mxu0 %v1606
        %v1950 = vpop.f32.mrb[0].mxu0
        %v1951 = vadd.f32 %v1587, %v1950
        %v1952 = vpop.f32.mrb[0].mxu0
        %v1953 = vadd.f32 %v1587, %v1952
        %1954 = vmatprep.mubr.f32.mxu0 0.0
        %1955 = vmatmul.mubr.f32.gmra.mrb[0].mxu0 %v1609
        %v1956 = vpop.f32.mrb[0].mxu0
        %v1957 = vadd.f32 %v1592, %v1956
        %v1958 = vpop.f32.mrb[0].mxu0
        %v1959 = vadd.f32 %v1592, %v1958
        %1960 = vmatprep.mubr.f32.mxu0 0.0
        %1961 = vmatmul.mubr.f32.gmra.mrb[0].mxu0 %v1612
        %v1962 = vpop.f32.mrb[0].mxu0
        %v1963 = vadd.f32 %v1597, %v1962
        %v1964 = vpop.f32.mrb[0].mxu0
        %v1965 = vadd.f32 %v1597, %v1964
        %1966 = vmatprep.mubr.f32.mxu0 0.0
        %1967 = vmatmul.mubr.f32.gmra.mrb[0].mxu0 %v1615
        %v1968 = vpop.f32.mrb[0].mxu0
        %v1969 = vadd.f32 %v1602, %v1968
        %v1970 = vpop.f32.mrb[0].mxu0
        %v1971 = vadd.f32 %v1602, %v1970
        %1972 = vdwg.mxu0
        %vm1973 = vcmp.gt.f32.partialorder %v1684, 0.0
        %vm1974 = vcmp.gt.f32.partialorder %v1686, 0.0
        %vm1975 = vcmp.gt.f32.partialorder %v1773, 0.0
        %vm1976 = vcmp.gt.f32.partialorder %v1775, 0.0
        %vm1977 = vcmp.gt.f32.partialorder %v1862, 0.0
        %vm1978 = vcmp.gt.f32.partialorder %v1864, 0.0
        %vm1979 = vcmp.gt.f32.partialorder %v1951, 0.0
        %vm1980 = vcmp.gt.f32.partialorder %v1953, 0.0
        %vm1981 = vcmp.gt.f32.partialorder %v1690, 0.0
        %vm1982 = vcmp.gt.f32.partialorder %v1692, 0.0
        %vm1983 = vcmp.gt.f32.partialorder %v1779, 0.0
        %vm1984 = vcmp.gt.f32.partialorder %v1781, 0.0
        %vm1985 = vcmp.gt.f32.partialorder %v1868, 0.0
        %vm1986 = vcmp.gt.f32.partialorder %v1870, 0.0
        %vm1987 = vcmp.gt.f32.partialorder %v1957, 0.0
        %vm1988 = vcmp.gt.f32.partialorder %v1959, 0.0
        %vm1989 = vcmp.gt.f32.partialorder %v1696, 0.0
        %vm1990 = vcmp.gt.f32.partialorder %v1698, 0.0
        %vm1991 = vcmp.gt.f32.partialorder %v1785, 0.0
        %vm1992 = vcmp.gt.f32.partialorder %v1787, 0.0
        %vm1993 = vcmp.gt.f32.partialorder %v1874, 0.0
        %vm1994 = vcmp.gt.f32.partialorder %v1876, 0.0
        %vm1995 = vcmp.gt.f32.partialorder %v1963, 0.0
        %vm1996 = vcmp.gt.f32.partialorder %v1965, 0.0
        %vm1997 = vcmp.gt.f32.partialorder %v1702, 0.0
        %vm1998 = vcmp.gt.f32.partialorder %v1704, 0.0
        %vm1999 = vcmp.gt.f32.partialorder %v1791, 0.0
        %vm2000 = vcmp.gt.f32.partialorder %v1793, 0.0
        %vm2001 = vcmp.gt.f32.partialorder %v1880, 0.0
        %vm2002 = vcmp.gt.f32.partialorder %v1882, 0.0
        %vm2003 = vcmp.gt.f32.partialorder %v1969, 0.0
        %vm2004 = vcmp.gt.f32.partialorder %v1971, 0.0
        %v2005 = vmul.f32 %v1684, 0.2
        %v2006 = vmul.f32 %v1686, 0.2
        %v2007 = vmul.f32 %v1773, 0.2
        %v2008 = vmul.f32 %v1775, 0.2
        %v2009 = vmul.f32 %v1862, 0.2
        %v2010 = vmul.f32 %v1864, 0.2
        %v2011 = vmul.f32 %v1951, 0.2
        %v2012 = vmul.f32 %v1953, 0.2
        %v2013 = vmul.f32 %v1690, 0.2
        %v2014 = vmul.f32 %v1692, 0.2
        %v2015 = vmul.f32 %v1779, 0.2
        %v2016 = vmul.f32 %v1781, 0.2
        %v2017 = vmul.f32 %v1868, 0.2
        %v2018 = vmul.f32 %v1870, 0.2
        %v2019 = vmul.f32 %v1957, 0.2
        %v2020 = vmul.f32 %v1959, 0.2
        %v2021 = vmul.f32 %v1696, 0.2
        %v2022 = vmul.f32 %v1698, 0.2
        %v2023 = vmul.f32 %v1785, 0.2
        %v2024 = vmul.f32 %v1787, 0.2
        %v2025 = vmul.f32 %v1874, 0.2
        %v2026 = vmul.f32 %v1876, 0.2
        %v2027 = vmul.f32 %v1963, 0.2
        %v2028 = vmul.f32 %v1965, 0.2
        %v2029 = vmul.f32 %v1702, 0.2
        %v2030 = vmul.f32 %v1704, 0.2
        %v2031 = vmul.f32 %v1791, 0.2
        %v2032 = vmul.f32 %v1793, 0.2
        %v2033 = vmul.f32 %v1880, 0.2
        %v2034 = vmul.f32 %v1882, 0.2
        %v2035 = vmul.f32 %v1969, 0.2
        %v2036 = vmul.f32 %v1971, 0.2
        %v2037 = vsel %vm1973, %v1684, %v2005
        %v2038 = vsel %vm1974, %v1686, %v2006
        %v2039 = vsel %vm1975, %v1773, %v2007
        %v2040 = vsel %vm1976, %v1775, %v2008
        %v2041 = vsel %vm1977, %v1862, %v2009
        %v2042 = vsel %vm1978, %v1864, %v2010
        %v2043 = vsel %vm1979, %v1951, %v2011
        %v2044 = vsel %vm1980, %v1953, %v2012
        %v2045 = vsel %vm1981, %v1690, %v2013
        %v2046 = vsel %vm1982, %v1692, %v2014
        %v2047 = vsel %vm1983, %v1779, %v2015
        %v2048 = vsel %vm1984, %v1781, %v2016
        %v2049 = vsel %vm1985, %v1868, %v2017
        %v2050 = vsel %vm1986, %v1870, %v2018
        %v2051 = vsel %vm1987, %v1957, %v2019
        %v2052 = vsel %vm1988, %v1959, %v2020
        %v2053 = vsel %vm1989, %v1696, %v2021
        %v2054 = vsel %vm1990, %v1698, %v2022
        %v2055 = vsel %vm1991, %v1785, %v2023
        %v2056 = vsel %vm1992, %v1787, %v2024
        %v2057 = vsel %vm1993, %v1874, %v2025
        %v2058 = vsel %vm1994, %v1876, %v2026
        %v2059 = vsel %vm1995, %v1963, %v2027
        %v2060 = vsel %vm1996, %v1965, %v2028
        %v2061 = vsel %vm1997, %v1702, %v2029
        %v2062 = vsel %vm1998, %v1704, %v2030
        %v2063 = vsel %vm1999, %v1791, %v2031
        %v2064 = vsel %vm2000, %v1793, %v2032
        %v2065 = vsel %vm2001, %v1880, %v2033
        %v2066 = vsel %vm2002, %v1882, %v2034
        %v2067 = vsel %vm2003, %v1969, %v2035
        %v2068 = vsel %vm2004, %v1971, %v2036
        %v2069 = vadd.f32 %v1544, %v1545
        %v2070 = vadd.f32 %v1552, %v1553
        %v2071 = vadd.f32 %v1560, %v1561
        %v2072 = vadd.f32 %v1568, %v1569
        %v2073 = vadd.f32 %v2037, %v2038
        %v2074 = vadd.f32 %v2045, %v2046
        %v2075 = vadd.f32 %v2053, %v2054
        %v2076 = vadd.f32 %v2061, %v2062
        %v2077 = vadd.f32 %v2069, %v1546
        %v2078 = vadd.f32 %v2070, %v1554
        %v2079 = vadd.f32 %v2071, %v1562
        %v2080 = vadd.f32 %v2072, %v1570
        %v2081 = vadd.f32 %v2073, %v2039
        %v2082 = vadd.f32 %v2074, %v2047
        %v2083 = vadd.f32 %v2075, %v2055
        %v2084 = vadd.f32 %v2076, %v2063
        %v2085 = vadd.f32 %v2077, %v1547
        %v2086 = vadd.f32 %v2078, %v1555
        %v2087 = vadd.f32 %v2079, %v1563
        %v2088 = vadd.f32 %v2080, %v1571
        %v2089 = vadd.f32 %v2081, %v2040
        %v2090 = vadd.f32 %v2082, %v2048
        %v2091 = vadd.f32 %v2083, %v2056
        %v2092 = vadd.f32 %v2084, %v2064
        %v2093 = vadd.f32 %v2085, %v1548
        %v2094 = vadd.f32 %v2086, %v1556
        %v2095 = vadd.f32 %v2087, %v1564
        %v2096 = vadd.f32 %v2088, %v1572
        %v2097 = vadd.f32 %v2089, %v2041
        %v2098 = vadd.f32 %v2090, %v2049
        %v2099 = vadd.f32 %v2091, %v2057
        %v2100 = vadd.f32 %v2092, %v2065
        %v2101 = vadd.f32 %v2093, %v1549
        %v2102 = vadd.f32 %v2094, %v1557
        %v2103 = vadd.f32 %v2095, %v1565
        %v2104 = vadd.f32 %v2096, %v1573
        %v2105 = vadd.f32 %v2097, %v2042
        %v2106 = vadd.f32 %v2098, %v2050
        %v2107 = vadd.f32 %v2099, %v2058
        %v2108 = vadd.f32 %v2100, %v2066
        %v2109 = vadd.f32 %v2101, %v1550
        %v2110 = vadd.f32 %v2102, %v1558
        %v2111 = vadd.f32 %v2103, %v1566
        %v2112 = vadd.f32 %v2104, %v1574
        %v2113 = vadd.f32 %v2105, %v2043
        %v2114 = vadd.f32 %v2106, %v2051
        %v2115 = vadd.f32 %v2107, %v2059
        %v2116 = vadd.f32 %v2108, %v2067
        %v2117 = vadd.f32 %v2109, %v1551
        %v2118 = vadd.f32 %v2110, %v1559
        %v2119 = vadd.f32 %v2111, %v1567
        %v2120 = vadd.f32 %v2112, %v1575
        %v2121 = vadd.f32 %v2113, %v2044
        %v2122 = vadd.f32 %v2114, %v2052
        %v2123 = vadd.f32 %v2115, %v2060
        %v2124 = vadd.f32 %v2116, %v2068
        %v2125 = vld [vmem:[%s7] sm:$0xff]
        %v2126 = vld [vmem:[%s7 + $0x8] sm:$0xff]
        %v2127 = vld [vmem:[%s7 + $0x10] sm:$0xff]
        %v2128 = vld [vmem:[%s7 + $0x18] sm:$0xff]
        %v2129 = vld [vmem:[%s8] sm:$0xff]
        %v2130 = vld [vmem:[%s8 + $0x8] sm:$0xff]
        %v2131 = vld [vmem:[%s8 + $0x10] sm:$0xff]
        %v2132 = vld [vmem:[%s8 + $0x18] sm:$0xff]
        %2134 = vset.pattern.permute.xlu0 0
        %2135 = vperm.xlu0 %2134, %v2129
        %v2136 = vpop.permute.xlu0 %2135
        %2139 = vset.pattern.permute.xlu0 0
        %2140 = vperm.xlu0 %2139, %v2130
        %v2141 = vpop.permute.xlu0 %2140
        %2144 = vset.pattern.permute.xlu0 0
        %2145 = vperm.xlu0 %2144, %v2131
        %v2146 = vpop.permute.xlu0 %2145
        %2149 = vset.pattern.permute.xlu0 0
        %2150 = vperm.xlu0 %2149, %v2132
        %v2151 = vpop.permute.xlu0 %2150
        %vm2153 = vcmask 523264
        %v2155 = vsel %vm2153, %v2125, 0
        %v2158 = vsel %vm2153, %v2126, 0
        %v2161 = vsel %vm2153, %v2127, 0
        %v2164 = vsel %vm2153, %v2128, 0
        %2166 = vmatprep.subr.mxu0 0.0
        %2167 = vmatpush1.msra.mxu0 %v2117
        %2168 = vmatprep.subr.mxu0 0.0
        %2169 = vmatpush1.msra.mxu0 %v2118
        %2170 = vmatprep.subr.mxu0 0.0
        %2171 = vmatpush1.msra.mxu0 %v2119
        %2172 = vmatprep.subr.mxu0 0.0
        %2173 = vmatpush1.msra.mxu0 %v2120
        %2174 = vmatprep.subr.mxu0 0.0
        %2175 = vmatpush1.msra.mxu0 %v2121
        %2176 = vmatprep.subr.mxu0 0.0
        %2177 = vmatpush1.msra.mxu0 %v2122
        %2178 = vmatprep.subr.mxu0 0.0
        %2179 = vmatpush1.msra.mxu0 %v2123
        %2180 = vmatprep.subr.mxu0 0.0
        %2181 = vmatpush1.msra.mxu0 %v2124
        %2182 = vmatprep.subr.mxu0 0.0
        %2183 = vmatpush1.msra.mxu0 0.0
        %2184 = vmatprep.subr.mxu0 0.0
        %2185 = vmatpush1.msra.mxu0 0.0
        %2186 = vmatprep.subr.mxu0 0.0
        %2187 = vmatpush1.msra.mxu0 0.0
        %2188 = vmatprep.subr.mxu0 0.0
        %2189 = vmatpush1.msra.mxu0 0.0
        %2190 = vmatprep.subr.mxu0 0.0
        %2191 = vmatpush1.msra.mxu0 0.0
        %2192 = vmatprep.subr.mxu0 0.0
        %2193 = vmatpush1.msra.mxu0 0.0
        %2194 = vmatprep.subr.mxu0 0.0
        %2195 = vmatpush1.msra.mxu0 0.0
        %2196 = vmatprep.subr.mxu0 0.0
        %2197 = vmatpush1.msra.mxu0 0.0
        %2198 = vmatprep.subr.mxu0 0.0
        %2199 = vmatpush1.msra.mxu0 0.0
        %2200 = vmatprep.subr.mxu0 0.0
        %2201 = vmatpush1.msra.mxu0 0.0
        %2202 = vmatprep.subr.mxu0 0.0
        %2203 = vmatpush1.msra.mxu0 0.0
        %2204 = vmatprep.subr.mxu0 0.0
        %2205 = vmatpush1.msra.mxu0 0.0
        %2206 = vmatprep.subr.mxu0 0.0
        %2207 = vmatpush1.msra.mxu0 0.0
        %2208 = vmatprep.subr.mxu0 0.0
        %2209 = vmatpush1.msra.mxu0 0.0
        %2210 = vmatprep.subr.mxu0 0.0
        %2211 = vmatpush1.msra.mxu0 0.0
        %2212 = vmatprep.subr.mxu0 0.0
        %2213 = vmatpush1.msra.mxu0 0.0
        %2214 = vmatprep.subr.mxu0 0.0
        %2215 = vmatpush1.msra.mxu0 0.0
        %2216 = vmatprep.subr.mxu0 0.0
        %2217 = vmatpush1.msra.mxu0 0.0
        %2218 = vmatprep.subr.mxu0 0.0
        %2219 = vmatpush1.msra.mxu0 0.0
        %2220 = vmatprep.subr.mxu0 0.0
        %2221 = vmatpush1.msra.mxu0 0.0
        %2222 = vmatprep.subr.mxu0 0.0
        %2223 = vmatpush1.msra.mxu0 0.0
        %2224 = vmatprep.subr.mxu0 0.0
        %2225 = vmatpush1.msra.mxu0 0.0
        %2226 = vmatprep.subr.mxu0 0.0
        %2227 = vmatpush1.msra.mxu0 0.0
        %2228 = vmatprep.subr.mxu0 0.0
        %2229 = vmatpush1.msra.mxu0 0.0
        %2230 = vmatprep.mubr.f32.mxu0 0.0
        %2231 = vmatmul.mubr.f32.gmra.mrb[0].mxu0 %v2155
        %v2232 = vpop.f32.mrb[0].mxu0
        %v2233 = vadd.f32 %v2136, %v2232
        %v2234 = vpop.f32.mrb[0].mxu0
        %2235 = vmatprep.mubr.f32.mxu0 0.0
        %2236 = vmatmul.mubr.f32.gmra.mrb[0].mxu0 %v2158
        %v2237 = vpop.f32.mrb[0].mxu0
        %v2238 = vadd.f32 %v2141, %v2237
        %v2239 = vpop.f32.mrb[0].mxu0
        %2240 = vmatprep.mubr.f32.mxu0 0.0
        %2241 = vmatmul.mubr.f32.gmra.mrb[0].mxu0 %v2161
        %v2242 = vpop.f32.mrb[0].mxu0
        %v2243 = vadd.f32 %v2146, %v2242
        %v2244 = vpop.f32.mrb[0].mxu0
        %2245 = vmatprep.mubr.f32.mxu0 0.0
        %2246 = vmatmul.mubr.f32.gmra.mrb[0].mxu0 %v2164
        %v2247 = vpop.f32.mrb[0].mxu0
        %v2248 = vadd.f32 %v2151, %v2247
        %v2249 = vpop.f32.mrb[0].mxu0
        %2250 = vdwg.mxu0
        %vm2251 = vcmp.gt.f32.partialorder %v2233, 0.0
        %vm2252 = vcmp.gt.f32.partialorder %v2238, 0.0
        %vm2253 = vcmp.gt.f32.partialorder %v2243, 0.0
        %vm2254 = vcmp.gt.f32.partialorder %v2248, 0.0
        %v2255 = vmul.f32 %v2233, 0.2
        %v2256 = vmul.f32 %v2238, 0.2
        %v2257 = vmul.f32 %v2243, 0.2
        %v2258 = vmul.f32 %v2248, 0.2
        %v2259 = vsel %vm2251, %v2233, %v2255
        %v2260 = vsel %vm2252, %v2238, %v2256
        %v2261 = vsel %vm2253, %v2243, %v2257
        %v2262 = vsel %vm2254, %v2248, %v2258
        %2263 = vst [vmem:[%s375] sm:$0xff] %v2259
        %2264 = vst [vmem:[%s375 + $0x8] sm:$0xff] %v2260
        %2265 = vst [vmem:[%s375 + $0x10] sm:$0xff] %v2261
        %2266 = vst [vmem:[%s375 + $0x18] sm:$0xff] %v2262
        %s2267 = sand.u32 %s251, 1
        %s2268 = scalar_lea.sflag [#allocation4], %s2267
        %s2269 = sand.u32 %s251, 1
        %s2270 = smul.addr %s2269, 32
        %s2271 = scalar_lea.vmem [#allocation3], %s2270
        // Predicated region
        $region57: #{tpu_custom_call.1} parent=55 // pred_check
          %p2272 = pneg %p261
        $region58: #{tpu_custom_call.1} parent=55 // pred_check_branch
          %2274 = sbr.rel (%p2272) target = $region60
        $region59: #{tpu_custom_call.1} parent=55 // pred_region
          %s2276 = ssub.s32 512, 512
          %2277 = vsyncadd %s2268, %s2276
          %s2278 = smul.addr %s27, 4
          %s2279 = sadd.s32 %s28, %s2278
          %s2280 = smul.addr %s2279, 128
          %s2281 = scalar_lea.hbm %s9, %s2280
          %s2282 = sshll.u32 %s2271, 4
          %s2283 = int_to_ptr.vmem [resolvable:$true] %s2282
          %2288 = dma.vmem_to_hbm [thread:$0]  %s2283, 512, %s2281, %s2268, 128, 128, 8
        $region60: #{tpu_custom_call.1} parent=55 // pred_fallthru
          _
      $region56: #{tpu_custom_call.1} parent=5 // pred_fallthru
        _
      %p2289 = scmp.le.s32.totalorder 2, %s18
      // Predicated region
      $region61: #{tpu_custom_call.1} parent=5 // pred_check
        %p2290 = pneg %p2289
      $region62: #{tpu_custom_call.1} parent=5 // pred_check_branch
        %2292 = sbr.rel (%p2290) target = $region64
      $region63: #{tpu_custom_call.1} parent=5 // pred_region
        %s2293 = ssub.s32 %s18, 2
        // Predicated region
        $region65: #{tpu_custom_call.1} parent=63 // pred_check
          %p2294 = pneg %p267
        $region66: #{tpu_custom_call.1} parent=63 // pred_check_branch
          %2296 = sbr.rel (%p2294) target = $region68
        $region67: #{tpu_custom_call.1} parent=63 // pred_region
          %s2297 = sand.u32 %s252, 1
          %s2298 = scalar_lea.sflag [#allocation4], %s2297
          %s2299 = sand.u32 %s252, 1
          %s2300 = smul.addr %s2299, 32
          %s2301 = scalar_lea.vmem [#allocation3], %s2300
          %2302 = dma.done %s2298, 512
        $region68: #{tpu_custom_call.1} parent=63 // pred_fallthru
          _
      $region64: #{tpu_custom_call.1} parent=5 // pred_fallthru
        _
    $region6: #{tpu_custom_call.1} parent=1 // loop_footer
      %s22 = sadd.s32 1, %s18
    $region7: #{tpu_custom_call.1} parent=1 // loop_footer_branch
      %17 = sbr.rel target = $region3
    $region8: #{tpu_custom_call.1} parent=1 // loop_exit
      _
    %2303 = vsyncpa [#allocation4], 1
    %s2304 = scalar_lea.sflag [#allocation4], 1
    %2305 = vsyncpa %s2304, 1

</llo_original>
